<compile_context>
chip_gen: v6e
topology: v6e:2x2x1
jax: 0.10.0
libtpu: 0.0.40
codegen_flags: <defaults>
</compile_context>

<pallas_src>
import jax
import jax.numpy as jnp
from jax.experimental import pallas as pl
from jax.experimental.pallas import tpu as pltpu

NUM_HEADS = 4
OUT_DIM = 8
HO = NUM_HEADS * OUT_DIM          # 32
NEG_SLOPE = 0.2


def _choose_tile_n(n: int) -> int:
    """Large tiles amortize the ~0.35us per-grid-step overhead (the kernel is
    HBM/overhead-bound), but keep >= 2 grid steps where possible so the
    'parallel' grid axis shards across v7x's two TensorCores."""
    target = 1024                          # 512-2048 is the HBM-roofline sweet spot
    tile = min(target, (n + 1) // 2)       # >= 2 grid steps when n allows it
    tile = max(8, (tile // 8) * 8)         # sublane-aligned
    return min(tile, n) if n >= 8 else max(n, 1)


def macro_conv_kernel(node_ref, rel_ref, wr_ref, br_ref,
                      wns_ref, bns_ref, wrs_ref, brs_ref, exp_ref, out_ref):
    num_rel = rel_ref.shape[0]
    exp_mat = exp_ref[...]                                        # (H, HO), hoisted once

    # Relation-independent half of the logits. Attention was folded into the
    # node weights in the wrapper, so h_node is never materialized.
    e_node = jnp.dot(node_ref[...], wns_ref[...],
                     preferred_element_type=jnp.float32) + bns_ref[...]    # (T, H)

    # Per-relation logits (static unroll, R is small). Only tiny (T, H)
    # temporaries are kept live across the softmax.
    scores = []
    for r in range(num_rel):
        e_r = e_node + jnp.dot(rel_ref[r], wrs_ref[r],
                               preferred_element_type=jnp.float32) + brs_ref[r]
        scores.append(jnp.maximum(e_r, NEG_SLOPE * e_r))          # leaky ReLU = 1 vmax

    # Softmax over relations (per node, per head).
    m = scores[0]
    for r in range(1, num_rel):
        m = jnp.maximum(m, scores[r])
    ps = [jnp.exp(s - m) for s in scores]
    denom = ps[0]
    for r in range(1, num_rel):
        denom = denom + ps[r]
    inv = pl.reciprocal(denom, approx=True)                       # EUP, (T, H)

    # Weighted aggregation. Each h_rel is projected exactly once, here, so no
    # (T, HO) f32 list stays live across the softmax even at large TILE_N.
    acc = jnp.zeros((node_ref.shape[0], HO), jnp.float32)
    for r in range(num_rel):
        h_r = jnp.dot(rel_ref[r], wr_ref[r],
                      preferred_element_type=jnp.float32) + br_ref[r]      # (T, HO)
        a_r = jnp.dot(ps[r] * inv, exp_mat,
                      preferred_element_type=jnp.float32)                  # (T, HO)
        acc = acc + a_r * h_r

    # Compact store: output array is (N, HO); no 128-lane padding, no wrapper
    # slice, so HBM write traffic is exactly the useful bytes.
    out_ref[...] = acc


def macro_conv(node_feat, rel_feats, w_node, b_node, w_rel, b_rel, attn):
    """One destination node type, R > 1 incoming relations (attention path)."""
    n, d_node = node_feat.shape
    num_rel, _, d_rel = rel_feats.shape
    # TODO(synk): dict-over-ntypes orchestration and the R==1 passthrough
    # (plain fc_rel projection + reshape, no kernel) live outside this kernel;
    # also assumes all relations feeding this ntype share one feature width.

    # Block-diagonal (HO, H) folding of the two attn halves: per-head "sum
    # over O" reductions become plain matmuls.
    head_of_row = jnp.arange(HO) // OUT_DIM                                # (HO,)
    blk = (head_of_row[:, None] == jnp.arange(NUM_HEADS)[None, :]).astype(jnp.float32)
    a_node = blk * attn[:, :OUT_DIM].reshape(HO, 1)                        # (HO, H)
    a_rel = blk * attn[:, OUT_DIM:].reshape(HO, 1)                         # (HO, H)
    exp_mat = blk.T                                                        # (H, HO)

    # Fold attention into the linear weights so the kernel never materializes
    # h_node and computes each h_rel only once (output path).
    wn_s = (w_node @ a_node).astype(jnp.bfloat16)                          # (d_node, H)
    bn_s = b_node @ a_node                                                 # (1, H) f32
    wr_s = jnp.einsum('rdo,oh->rdh', w_rel, a_rel).astype(jnp.bfloat16)    # (R, d_rel, H)
    br_s = jnp.einsum('rxo,oh->rxh', b_rel, a_rel)                         # (R, 1, H) f32

    # bf16 inputs/weights halve the dominant HBM read stream; all matmuls in
    # the kernel accumulate in f32 via preferred_element_type.
    node_bf = node_feat.astype(jnp.bfloat16)
    rel_bf = rel_feats.astype(jnp.bfloat16)
    wr_bf = w_rel.astype(jnp.bfloat16)

    tile_n = _choose_tile_n(n)
    grid = (pl.cdiv(n, tile_n),)       # masked tail block handles n % tile_n != 0

    flops = n * (
        2 * d_node * NUM_HEADS
        + num_rel * (2 * d_rel * NUM_HEADS + 2 * d_rel * HO
                     + 2 * NUM_HEADS * HO + 4 * HO + 8 * NUM_HEADS))
    transcendentals = n * NUM_HEADS * (num_rel + 1)                # exps + reciprocal
    bytes_accessed = (node_bf.size * 2 + rel_bf.size * 2 + n * HO * 4
                      + wr_bf.size * 2 + b_rel.size * 4
                      + wn_s.size * 2 + bn_s.size * 4
                      + wr_s.size * 2 + br_s.size * 4 + exp_mat.size * 4)

    out_shape = jax.ShapeDtypeStruct((n, HO), jnp.float32)
    out = pl.pallas_call(
        macro_conv_kernel,
        out_shape=out_shape,
        grid_spec=pltpu.PrefetchScalarGridSpec(
            num_scalar_prefetch=0,
            grid=grid,
            in_specs=[
                pl.BlockSpec((tile_n, d_node), lambda i: (i, 0)),
                pl.BlockSpec((num_rel, tile_n, d_rel), lambda i: (0, i, 0)),
                pl.BlockSpec(wr_bf.shape, lambda i: (0, 0, 0)),
                pl.BlockSpec(b_rel.shape, lambda i: (0, 0, 0)),
                pl.BlockSpec(wn_s.shape, lambda i: (0, 0)),
                pl.BlockSpec(bn_s.shape, lambda i: (0, 0)),
                pl.BlockSpec(wr_s.shape, lambda i: (0, 0, 0)),
                pl.BlockSpec(br_s.shape, lambda i: (0, 0, 0)),
                pl.BlockSpec(exp_mat.shape, lambda i: (0, 0)),
            ],
            out_specs=pl.BlockSpec((tile_n, HO), lambda i: (i, 0)),
        ),
        compiler_params=pltpu.CompilerParams(
            # destination-node axis is independent -> shards across v7x's 2 TCs
            dimension_semantics=("parallel",),
            # Re-derived budget: at tile_n=1024 the double-buffered bf16 node +
            # rel tiles plus the f32 output tile are well under 1 MiB, so 32 MiB
            # leaves huge headroom on v7x (64 MiB physical) and v5e/v6e (128 MiB).
            vmem_limit_bytes=32 * 1024 * 1024,
        ),
        cost_estimate=pl.CostEstimate(
            flops=flops,
            transcendentals=transcendentals,
            bytes_accessed=bytes_accessed,
        ),
    )(node_bf, rel_bf, wr_bf, b_rel, wn_s, bn_s, wr_s, br_s, exp_mat)

    return out


def macro_conv_ref(node_feat, rel_feats, w_node, b_node, w_rel, b_rel, attn):
    """Plain-JAX reference mirroring the PyTorch forward (R>1 branch)."""
    num_rel = rel_feats.shape[0]
    h_node = (node_feat @ w_node + b_node).reshape(-1, NUM_HEADS, OUT_DIM)
    h_rel = jnp.einsum('rnd,rdo->rno', rel_feats, w_rel) + b_rel
    h_rel = h_rel.reshape(num_rel, -1, NUM_HEADS, OUT_DIM)
    cat = jnp.concatenate(
        [jnp.broadcast_to(h_node[None], h_rel.shape), h_rel], axis=-1)     # (R,N,H,2O)
    s = jnp.sum(attn[None, None] * cat, axis=-1, keepdims=True)
    s = jnp.where(s > 0, s, NEG_SLOPE * s)
    a = jax.nn.softmax(s, axis=0)
    out = jnp.sum(a * h_rel, axis=0)                                       # (N,H,O)
    return out.reshape(-1, NUM_HEADS * OUT_DIM)


if __name__ == "__main__":
    key = jax.random.PRNGKey(0)
    ks = jax.random.split(key, 7)

    N, D_NODE, D_REL, R = 128, 32, 32, 3

    node_feat = jax.random.normal(ks[0], (N, D_NODE), jnp.float32)
    rel_feats = jax.random.normal(ks[1], (R, N, D_REL), jnp.float32)

    # fc_node / fc_rel: nn.Linear(D, NUM_HEADS*OUT_DIM) per ntype / relation.
    w_node = jax.random.normal(ks[2], (D_NODE, HO), jnp.float32) * 0.1
    b_node = jax.random.normal(ks[3], (1, HO), jnp.float32) * 0.1
    w_rel = jax.random.normal(ks[4], (R, D_REL, HO), jnp.float32) * 0.1
    b_rel = jax.random.normal(ks[5], (R, 1, HO), jnp.float32) * 0.1

    # attn: nn.Parameter broadcasting over (R, N, H, 2*O).
    attn = jax.random.normal(ks[6], (NUM_HEADS, 2 * OUT_DIM), jnp.float32) * 0.1

    # dropout = 0.0 in this instantiation -> identity.
    out = macro_conv(node_feat, rel_feats, w_node, b_node, w_rel, b_rel, attn)
    out = jax.block_until_ready(out)
    assert out.shape == (N, HO)

    # Tight check against a reference fed the same bf16-quantized inputs
    # (isolates kernel math from the intentional bf16 input cast).
    q = lambda a: a.astype(jnp.bfloat16).astype(jnp.float32)
    ref_q = macro_conv_ref(q(node_feat), q(rel_feats), q(w_node), b_node,
                           q(w_rel), b_rel, attn)
    assert jnp.allclose(out, ref_q, atol=5e-3, rtol=5e-3), "mismatch vs bf16-input ref"

    # Fidelity check against the exact f32 reference (bf16 input cast error).
    ref = macro_conv_ref(node_feat, rel_feats, w_node, b_node, w_rel, b_rel, attn)
    assert jnp.allclose(out, ref, atol=2e-2, rtol=2e-2), "mismatch vs f32 ref"

    # Tail case: N not a multiple of the chosen tile -> pl.cdiv grid + masked
    # last block (no divisibility assert, no wrapper padding copy).
    N2 = 104
    out2 = macro_conv(node_feat[:N2], rel_feats[:, :N2], w_node, b_node,
                      w_rel, b_rel, attn)
    out2 = jax.block_until_ready(out2)
    ref2 = macro_conv_ref(node_feat[:N2], rel_feats[:, :N2], w_node, b_node,
                          w_rel, b_rel, attn)
    assert out2.shape == (N2, HO)
    assert jnp.allclose(out2, ref2, atol=2e-2, rtol=2e-2), "mismatch on tail tile"

    print("KERNEL_OK")
</pallas_src>

<mosaic_0001>
module attributes {stable_mosaic.version = 11 : i64} {
  func.func @macro_conv_kernel(%arg0: i32, %arg1: memref<64x32xbf16, #tpu.memory_space<vmem>>, %arg2: memref<3x64x32xbf16, #tpu.memory_space<vmem>>, %arg3: memref<3x32x32xbf16, #tpu.memory_space<vmem>>, %arg4: memref<3x1x32xf32, #tpu.memory_space<vmem>>, %arg5: memref<32x4xbf16, #tpu.memory_space<vmem>>, %arg6: memref<1x4xf32, #tpu.memory_space<vmem>>, %arg7: memref<3x32x4xbf16, #tpu.memory_space<vmem>>, %arg8: memref<3x1x4xf32, #tpu.memory_space<vmem>>, %arg9: memref<4x32xf32, #tpu.memory_space<vmem>>, %arg10: memref<64x32xf32, #tpu.memory_space<vmem>>) attributes {dimension_semantics = [#tpu.dimension_semantics<parallel>], iteration_bounds = array<i64: 2>, scalar_prefetch = 0 : i64, scratch_operands = 0 : i64, tpu.core_type = #tpu.core_type<tc>, window_params = [{transform_indices = @transform_0, window_bounds = array<i64: 64, 32>}, {transform_indices = @transform_1, window_bounds = array<i64: 3, 64, 32>}, {pipeline_mode = #tpu.pipeline_mode<synchronous>, transform_indices = @transform_2, window_bounds = array<i64: 3, 32, 32>}, {pipeline_mode = #tpu.pipeline_mode<synchronous>, transform_indices = @transform_3, window_bounds = array<i64: 3, 1, 32>}, {pipeline_mode = #tpu.pipeline_mode<synchronous>, transform_indices = @transform_4, window_bounds = array<i64: 32, 4>}, {pipeline_mode = #tpu.pipeline_mode<synchronous>, transform_indices = @transform_5, window_bounds = array<i64: 1, 4>}, {pipeline_mode = #tpu.pipeline_mode<synchronous>, transform_indices = @transform_6, window_bounds = array<i64: 3, 32, 4>}, {pipeline_mode = #tpu.pipeline_mode<synchronous>, transform_indices = @transform_7, window_bounds = array<i64: 3, 1, 4>}, {pipeline_mode = #tpu.pipeline_mode<synchronous>, transform_indices = @transform_8, window_bounds = array<i64: 4, 32>}, {transform_indices = @transform_9, window_bounds = array<i64: 64, 32>}]} {
    %c0 = arith.constant 0 : index
    %c0_0 = arith.constant 0 : index
    %0 = vector.load %arg9[%c0, %c0_0] : memref<4x32xf32, #tpu.memory_space<vmem>>, vector<4x32xf32>
    %c0_1 = arith.constant 0 : index
    %c0_2 = arith.constant 0 : index
    %1 = vector.load %arg1[%c0_1, %c0_2] : memref<64x32xbf16, #tpu.memory_space<vmem>>, vector<64x32xbf16>
    %c0_3 = arith.constant 0 : index
    %c0_4 = arith.constant 0 : index
    %2 = vector.load %arg5[%c0_3, %c0_4] : memref<32x4xbf16, #tpu.memory_space<vmem>>, vector<32x4xbf16>
    %cst = arith.constant dense<0.000000e+00> : vector<64x4xf32>
    %3 = tpu.matmul %1, %2, %cst {dimension_numbers = #tpu.dot_dimension_numbers<[1], [0], [0], [1], [0, 0, 1, 1], [], []>} : vector<64x32xbf16>, vector<32x4xbf16>, vector<64x4xf32> -> vector<64x4xf32>
    %c0_5 = arith.constant 0 : index
    %c0_6 = arith.constant 0 : index
    %4 = vector.load %arg6[%c0_5, %c0_6] : memref<1x4xf32, #tpu.memory_space<vmem>>, vector<1x4xf32>
    %5 = vector.broadcast %4 : vector<1x4xf32> to vector<64x4xf32>
    %6 = arith.addf %3, %5 : vector<64x4xf32>
    %c0_7 = arith.constant 0 : index
    %c0_8 = arith.constant 0 : index
    %c0_9 = arith.constant 0 : index
    %7 = vector.load %arg2[%c0_7, %c0_8, %c0_9] : memref<3x64x32xbf16, #tpu.memory_space<vmem>>, vector<1x64x32xbf16>
    %8 = vector.shape_cast %7 : vector<1x64x32xbf16> to vector<64x32xbf16>
    %c0_10 = arith.constant 0 : index
    %c0_11 = arith.constant 0 : index
    %c0_12 = arith.constant 0 : index
    %9 = vector.load %arg7[%c0_10, %c0_11, %c0_12] : memref<3x32x4xbf16, #tpu.memory_space<vmem>>, vector<1x32x4xbf16>
    %10 = vector.shape_cast %9 : vector<1x32x4xbf16> to vector<32x4xbf16>
    %cst_13 = arith.constant dense<0.000000e+00> : vector<64x4xf32>
    %11 = tpu.matmul %8, %10, %cst_13 {dimension_numbers = #tpu.dot_dimension_numbers<[1], [0], [0], [1], [0, 0, 1, 1], [], []>} : vector<64x32xbf16>, vector<32x4xbf16>, vector<64x4xf32> -> vector<64x4xf32>
    %12 = arith.addf %6, %11 : vector<64x4xf32>
    %c0_14 = arith.constant 0 : index
    %c0_15 = arith.constant 0 : index
    %c0_16 = arith.constant 0 : index
    %13 = vector.load %arg8[%c0_14, %c0_15, %c0_16] : memref<3x1x4xf32, #tpu.memory_space<vmem>>, vector<1x1x4xf32>
    %14 = vector.shape_cast %13 : vector<1x1x4xf32> to vector<1x4xf32>
    %15 = vector.broadcast %14 : vector<1x4xf32> to vector<64x4xf32>
    %16 = arith.addf %12, %15 : vector<64x4xf32>
    %cst_17 = arith.constant 2.000000e-01 : f32
    %17 = vector.broadcast %cst_17 : f32 to vector<64x4xf32>
    %18 = arith.mulf %17, %16 : vector<64x4xf32>
    %19 = arith.maximumf %16, %18 : vector<64x4xf32>
    %c1 = arith.constant 1 : index
    %c0_18 = arith.constant 0 : index
    %c0_19 = arith.constant 0 : index
    %20 = vector.load %arg2[%c1, %c0_18, %c0_19] : memref<3x64x32xbf16, #tpu.memory_space<vmem>>, vector<1x64x32xbf16>
    %21 = vector.shape_cast %20 : vector<1x64x32xbf16> to vector<64x32xbf16>
    %c1_20 = arith.constant 1 : index
    %c0_21 = arith.constant 0 : index
    %c0_22 = arith.constant 0 : index
    %22 = vector.load %arg7[%c1_20, %c0_21, %c0_22] : memref<3x32x4xbf16, #tpu.memory_space<vmem>>, vector<1x32x4xbf16>
    %23 = vector.shape_cast %22 : vector<1x32x4xbf16> to vector<32x4xbf16>
    %cst_23 = arith.constant dense<0.000000e+00> : vector<64x4xf32>
    %24 = tpu.matmul %21, %23, %cst_23 {dimension_numbers = #tpu.dot_dimension_numbers<[1], [0], [0], [1], [0, 0, 1, 1], [], []>} : vector<64x32xbf16>, vector<32x4xbf16>, vector<64x4xf32> -> vector<64x4xf32>
    %25 = arith.addf %6, %24 : vector<64x4xf32>
    %c1_24 = arith.constant 1 : index
    %c0_25 = arith.constant 0 : index
    %c0_26 = arith.constant 0 : index
    %26 = vector.load %arg8[%c1_24, %c0_25, %c0_26] : memref<3x1x4xf32, #tpu.memory_space<vmem>>, vector<1x1x4xf32>
    %27 = vector.shape_cast %26 : vector<1x1x4xf32> to vector<1x4xf32>
    %28 = vector.broadcast %27 : vector<1x4xf32> to vector<64x4xf32>
    %29 = arith.addf %25, %28 : vector<64x4xf32>
    %cst_27 = arith.constant 2.000000e-01 : f32
    %30 = vector.broadcast %cst_27 : f32 to vector<64x4xf32>
    %31 = arith.mulf %30, %29 : vector<64x4xf32>
    %32 = arith.maximumf %29, %31 : vector<64x4xf32>
    %c2 = arith.constant 2 : index
    %c0_28 = arith.constant 0 : index
    %c0_29 = arith.constant 0 : index
    %33 = vector.load %arg2[%c2, %c0_28, %c0_29] : memref<3x64x32xbf16, #tpu.memory_space<vmem>>, vector<1x64x32xbf16>
    %34 = vector.shape_cast %33 : vector<1x64x32xbf16> to vector<64x32xbf16>
    %c2_30 = arith.constant 2 : index
    %c0_31 = arith.constant 0 : index
    %c0_32 = arith.constant 0 : index
    %35 = vector.load %arg7[%c2_30, %c0_31, %c0_32] : memref<3x32x4xbf16, #tpu.memory_space<vmem>>, vector<1x32x4xbf16>
    %36 = vector.shape_cast %35 : vector<1x32x4xbf16> to vector<32x4xbf16>
    %cst_33 = arith.constant dense<0.000000e+00> : vector<64x4xf32>
    %37 = tpu.matmul %34, %36, %cst_33 {dimension_numbers = #tpu.dot_dimension_numbers<[1], [0], [0], [1], [0, 0, 1, 1], [], []>} : vector<64x32xbf16>, vector<32x4xbf16>, vector<64x4xf32> -> vector<64x4xf32>
    %38 = arith.addf %6, %37 : vector<64x4xf32>
    %c2_34 = arith.constant 2 : index
    %c0_35 = arith.constant 0 : index
    %c0_36 = arith.constant 0 : index
    %39 = vector.load %arg8[%c2_34, %c0_35, %c0_36] : memref<3x1x4xf32, #tpu.memory_space<vmem>>, vector<1x1x4xf32>
    %40 = vector.shape_cast %39 : vector<1x1x4xf32> to vector<1x4xf32>
    %41 = vector.broadcast %40 : vector<1x4xf32> to vector<64x4xf32>
    %42 = arith.addf %38, %41 : vector<64x4xf32>
    %cst_37 = arith.constant 2.000000e-01 : f32
    %43 = vector.broadcast %cst_37 : f32 to vector<64x4xf32>
    %44 = arith.mulf %43, %42 : vector<64x4xf32>
    %45 = arith.maximumf %42, %44 : vector<64x4xf32>
    %46 = arith.maximumf %19, %32 : vector<64x4xf32>
    %47 = arith.maximumf %46, %45 : vector<64x4xf32>
    %48 = arith.subf %19, %47 : vector<64x4xf32>
    %49 = math.exp %48 : vector<64x4xf32>
    %50 = arith.subf %32, %47 : vector<64x4xf32>
    %51 = math.exp %50 : vector<64x4xf32>
    %52 = arith.subf %45, %47 : vector<64x4xf32>
    %53 = math.exp %52 : vector<64x4xf32>
    %54 = arith.addf %49, %51 : vector<64x4xf32>
    %55 = arith.addf %54, %53 : vector<64x4xf32>
    %56 = tpu.reciprocal %55 {approx = true} : vector<64x4xf32> -> vector<64x4xf32>
    %cst_38 = arith.constant 0.000000e+00 : f32
    %57 = vector.broadcast %cst_38 : f32 to vector<64x32xf32>
    %c0_39 = arith.constant 0 : index
    %c0_40 = arith.constant 0 : index
    %c0_41 = arith.constant 0 : index
    %58 = vector.load %arg2[%c0_39, %c0_40, %c0_41] : memref<3x64x32xbf16, #tpu.memory_space<vmem>>, vector<1x64x32xbf16>
    %59 = vector.shape_cast %58 : vector<1x64x32xbf16> to vector<64x32xbf16>
    %c0_42 = arith.constant 0 : index
    %c0_43 = arith.constant 0 : index
    %c0_44 = arith.constant 0 : index
    %60 = vector.load %arg3[%c0_42, %c0_43, %c0_44] : memref<3x32x32xbf16, #tpu.memory_space<vmem>>, vector<1x32x32xbf16>
    %61 = vector.shape_cast %60 : vector<1x32x32xbf16> to vector<32x32xbf16>
    %cst_45 = arith.constant dense<0.000000e+00> : vector<64x32xf32>
    %62 = tpu.matmul %59, %61, %cst_45 {dimension_numbers = #tpu.dot_dimension_numbers<[1], [0], [0], [1], [0, 0, 1, 1], [], []>} : vector<64x32xbf16>, vector<32x32xbf16>, vector<64x32xf32> -> vector<64x32xf32>
    %c0_46 = arith.constant 0 : index
    %c0_47 = arith.constant 0 : index
    %c0_48 = arith.constant 0 : index
    %63 = vector.load %arg4[%c0_46, %c0_47, %c0_48] : memref<3x1x32xf32, #tpu.memory_space<vmem>>, vector<1x1x32xf32>
    %64 = vector.shape_cast %63 : vector<1x1x32xf32> to vector<1x32xf32>
    %65 = vector.broadcast %64 : vector<1x32xf32> to vector<64x32xf32>
    %66 = arith.addf %62, %65 : vector<64x32xf32>
    %67 = arith.mulf %49, %56 : vector<64x4xf32>
    %cst_49 = arith.constant dense<0.000000e+00> : vector<64x32xf32>
    %68 = tpu.matmul %67, %0, %cst_49 {dimension_numbers = #tpu.dot_dimension_numbers<[1], [0], [0], [1], [0, 0, 1, 1], [], []>} : vector<64x4xf32>, vector<4x32xf32>, vector<64x32xf32> -> vector<64x32xf32>
    %69 = arith.mulf %68, %66 : vector<64x32xf32>
    %70 = arith.addf %57, %69 : vector<64x32xf32>
    %c1_50 = arith.constant 1 : index
    %c0_51 = arith.constant 0 : index
    %c0_52 = arith.constant 0 : index
    %71 = vector.load %arg2[%c1_50, %c0_51, %c0_52] : memref<3x64x32xbf16, #tpu.memory_space<vmem>>, vector<1x64x32xbf16>
    %72 = vector.shape_cast %71 : vector<1x64x32xbf16> to vector<64x32xbf16>
    %c1_53 = arith.constant 1 : index
    %c0_54 = arith.constant 0 : index
    %c0_55 = arith.constant 0 : index
    %73 = vector.load %arg3[%c1_53, %c0_54, %c0_55] : memref<3x32x32xbf16, #tpu.memory_space<vmem>>, vector<1x32x32xbf16>
    %74 = vector.shape_cast %73 : vector<1x32x32xbf16> to vector<32x32xbf16>
    %cst_56 = arith.constant dense<0.000000e+00> : vector<64x32xf32>
    %75 = tpu.matmul %72, %74, %cst_56 {dimension_numbers = #tpu.dot_dimension_numbers<[1], [0], [0], [1], [0, 0, 1, 1], [], []>} : vector<64x32xbf16>, vector<32x32xbf16>, vector<64x32xf32> -> vector<64x32xf32>
    %c1_57 = arith.constant 1 : index
    %c0_58 = arith.constant 0 : index
    %c0_59 = arith.constant 0 : index
    %76 = vector.load %arg4[%c1_57, %c0_58, %c0_59] : memref<3x1x32xf32, #tpu.memory_space<vmem>>, vector<1x1x32xf32>
    %77 = vector.shape_cast %76 : vector<1x1x32xf32> to vector<1x32xf32>
    %78 = vector.broadcast %77 : vector<1x32xf32> to vector<64x32xf32>
    %79 = arith.addf %75, %78 : vector<64x32xf32>
    %80 = arith.mulf %51, %56 : vector<64x4xf32>
    %cst_60 = arith.constant dense<0.000000e+00> : vector<64x32xf32>
    %81 = tpu.matmul %80, %0, %cst_60 {dimension_numbers = #tpu.dot_dimension_numbers<[1], [0], [0], [1], [0, 0, 1, 1], [], []>} : vector<64x4xf32>, vector<4x32xf32>, vector<64x32xf32> -> vector<64x32xf32>
    %82 = arith.mulf %81, %79 : vector<64x32xf32>
    %83 = arith.addf %70, %82 : vector<64x32xf32>
    %c2_61 = arith.constant 2 : index
    %c0_62 = arith.constant 0 : index
    %c0_63 = arith.constant 0 : index
    %84 = vector.load %arg2[%c2_61, %c0_62, %c0_63] : memref<3x64x32xbf16, #tpu.memory_space<vmem>>, vector<1x64x32xbf16>
    %85 = vector.shape_cast %84 : vector<1x64x32xbf16> to vector<64x32xbf16>
    %c2_64 = arith.constant 2 : index
    %c0_65 = arith.constant 0 : index
    %c0_66 = arith.constant 0 : index
    %86 = vector.load %arg3[%c2_64, %c0_65, %c0_66] : memref<3x32x32xbf16, #tpu.memory_space<vmem>>, vector<1x32x32xbf16>
    %87 = vector.shape_cast %86 : vector<1x32x32xbf16> to vector<32x32xbf16>
    %cst_67 = arith.constant dense<0.000000e+00> : vector<64x32xf32>
    %88 = tpu.matmul %85, %87, %cst_67 {dimension_numbers = #tpu.dot_dimension_numbers<[1], [0], [0], [1], [0, 0, 1, 1], [], []>} : vector<64x32xbf16>, vector<32x32xbf16>, vector<64x32xf32> -> vector<64x32xf32>
    %c2_68 = arith.constant 2 : index
    %c0_69 = arith.constant 0 : index
    %c0_70 = arith.constant 0 : index
    %89 = vector.load %arg4[%c2_68, %c0_69, %c0_70] : memref<3x1x32xf32, #tpu.memory_space<vmem>>, vector<1x1x32xf32>
    %90 = vector.shape_cast %89 : vector<1x1x32xf32> to vector<1x32xf32>
    %91 = vector.broadcast %90 : vector<1x32xf32> to vector<64x32xf32>
    %92 = arith.addf %88, %91 : vector<64x32xf32>
    %93 = arith.mulf %53, %56 : vector<64x4xf32>
    %cst_71 = arith.constant dense<0.000000e+00> : vector<64x32xf32>
    %94 = tpu.matmul %93, %0, %cst_71 {dimension_numbers = #tpu.dot_dimension_numbers<[1], [0], [0], [1], [0, 0, 1, 1], [], []>} : vector<64x4xf32>, vector<4x32xf32>, vector<64x32xf32> -> vector<64x32xf32>
    %95 = arith.mulf %94, %92 : vector<64x32xf32>
    %96 = arith.addf %83, %95 : vector<64x32xf32>
    %c0_72 = arith.constant 0 : index
    %c0_73 = arith.constant 0 : index
    %97 = vector.load %arg10[%c0_72, %c0_73] : memref<64x32xf32, #tpu.memory_space<vmem>>, vector<64x32xf32>
    tpu.vector_store %arg10[%c0_72, %c0_73], %96 {strides = array<i32>} : memref<64x32xf32, #tpu.memory_space<vmem>>, vector<64x32xf32>,
    return
  }
  func.func @transform_0(%arg0: i32) -> (i32, i32) {
    %c0_i32 = arith.constant 0 : i32
    %c0_i32_0 = arith.constant 0 : i32
    return %arg0, %c0_i32 : i32, i32
  }
  func.func @transform_1(%arg0: i32) -> (i32, i32, i32) {
    %c0_i32 = arith.constant 0 : i32
    %c0_i32_0 = arith.constant 0 : i32
    %c0_i32_1 = arith.constant 0 : i32
    return %c0_i32, %arg0, %c0_i32_0 : i32, i32, i32
  }
  func.func @transform_2(%arg0: i32) -> (i32, i32, i32) {
    %c0_i32 = arith.constant 0 : i32
    %c0_i32_0 = arith.constant 0 : i32
    %c0_i32_1 = arith.constant 0 : i32
    %c0_i32_2 = arith.constant 0 : i32
    return %c0_i32, %c0_i32_0, %c0_i32_1 : i32, i32, i32
  }
  func.func @transform_3(%arg0: i32) -> (i32, i32, i32) {
    %c0_i32 = arith.constant 0 : i32
    %c0_i32_0 = arith.constant 0 : i32
    %c0_i32_1 = arith.constant 0 : i32
    %c0_i32_2 = arith.constant 0 : i32
    return %c0_i32, %c0_i32_0, %c0_i32_1 : i32, i32, i32
  }
  func.func @transform_4(%arg0: i32) -> (i32, i32) {
    %c0_i32 = arith.constant 0 : i32
    %c0_i32_0 = arith.constant 0 : i32
    %c0_i32_1 = arith.constant 0 : i32
    return %c0_i32, %c0_i32_0 : i32, i32
  }
  func.func @transform_5(%arg0: i32) -> (i32, i32) {
    %c0_i32 = arith.constant 0 : i32
    %c0_i32_0 = arith.constant 0 : i32
    %c0_i32_1 = arith.constant 0 : i32
    return %c0_i32, %c0_i32_0 : i32, i32
  }
  func.func @transform_6(%arg0: i32) -> (i32, i32, i32) {
    %c0_i32 = arith.constant 0 : i32
    %c0_i32_0 = arith.constant 0 : i32
    %c0_i32_1 = arith.constant 0 : i32
    %c0_i32_2 = arith.constant 0 : i32
    return %c0_i32, %c0_i32_0, %c0_i32_1 : i32, i32, i32
  }
  func.func @transform_7(%arg0: i32) -> (i32, i32, i32) {
    %c0_i32 = arith.constant 0 : i32
    %c0_i32_0 = arith.constant 0 : i32
    %c0_i32_1 = arith.constant 0 : i32
    %c0_i32_2 = arith.constant 0 : i32
    return %c0_i32, %c0_i32_0, %c0_i32_1 : i32, i32, i32
  }
  func.func @transform_8(%arg0: i32) -> (i32, i32) {
    %c0_i32 = arith.constant 0 : i32
    %c0_i32_0 = arith.constant 0 : i32
    %c0_i32_1 = arith.constant 0 : i32
    return %c0_i32, %c0_i32_0 : i32, i32
  }
  func.func @transform_9(%arg0: i32) -> (i32, i32) {
    %c0_i32 = arith.constant 0 : i32
    %c0_i32_0 = arith.constant 0 : i32
    return %arg0, %c0_i32 : i32, i32
  }
}

</mosaic_0001>

<llo_original>
// kernel: tpu_custom_call.1
$region0: #{tpu_custom_call.1}
  #allocation0 [shape = 'u32[]', space=smem, size = 0x4, offset = 0x4, fixed_abs, tag = 'smem constant byte address 0x4 - core index']
  #allocation1 [shape = 'u32[144,128]{1,0:T(1,128)}', space=vmem, size = 0x12000, scoped, tag = 'internal scratch']
  %s0 = inlined_call_operand.vmem [shape: bf16[128,32], index: 0, kind: input, shape index: {}]
  %s1 = inlined_call_operand.vmem [shape: bf16[3,128,32], index: 1, kind: input, shape index: {}]
  %s2 = inlined_call_operand.vmem [shape: bf16[3,32,32], index: 2, kind: input, shape index: {}]
  %s3 = inlined_call_operand.vmem [shape: f32[3,1,32], index: 3, kind: input, shape index: {}]
  %s4 = inlined_call_operand.vmem [shape: bf16[32,4], index: 4, kind: input, shape index: {}]
  %s5 = inlined_call_operand.vmem [shape: f32[1,4], index: 5, kind: input, shape index: {}]
  %s6 = inlined_call_operand.vmem [shape: bf16[3,32,4], index: 6, kind: input, shape index: {}]
  %s7 = inlined_call_operand.vmem [shape: f32[3,1,4], index: 7, kind: input, shape index: {}]
  %s8 = inlined_call_operand.vmem [shape: f32[4,32], index: 8, kind: input, shape index: {}]
  %s9 = inlined_call_operand.vmem [shape: f32[128,32], index: 9, kind: output, shape index: {}]
  %s10 = sld [smem:[#allocation0]]
  $region110: #{tpu_custom_call.1} parent=0
    _
  %s12 = ssub.s32 1, %s10
  %s13 = scalar_select 0, %s12, %s10
  $region1: #{tpu_custom_call.1} parent=0
    #allocation2 [shape = 'u8[98304]{0}', space=vmem, size = 0x18000, scoped, tag = 'input window, operand 1']
    loop: start=0, step=1, limit=4
    $region2: #{tpu_custom_call.1} parent=1 // loop_pre_header
      _
    $region3: #{tpu_custom_call.1} parent=1 // loop_header
      %s15 = sphi 0, %s19
      %p16 = scmp.ge.s32.totalorder %s15, 4
      %s25 = sphi 0, %s27
      %s28 = sphi 0, %s25
      %s29 = sphi 0, %s28
      %s45 = sphi 0, %s29
      %s51 = sphi 0, %s53
      %s54 = sphi 0, %s51
      %s55 = sphi 0, %s54
      %s71 = sphi 0, %s55
      %s75 = sphi 0, %s75
      %s77 = sphi 0, %s75
      %s78 = sphi 0, %s77
      %s92 = sphi 0, %s78
      %s96 = sphi 0, %s96
      %s98 = sphi 0, %s96
      %s99 = sphi 0, %s98
      %s113 = sphi 0, %s99
      %s117 = sphi 0, %s117
      %s119 = sphi 0, %s117
      %s120 = sphi 0, %s119
      %s134 = sphi 0, %s120
      %s138 = sphi 0, %s138
      %s140 = sphi 0, %s138
      %s141 = sphi 0, %s140
      %s155 = sphi 0, %s141
      %s159 = sphi 0, %s159
      %s161 = sphi 0, %s159
      %s162 = sphi 0, %s161
      %s176 = sphi 0, %s162
      %s180 = sphi 0, %s180
      %s182 = sphi 0, %s180
      %s183 = sphi 0, %s182
      %s197 = sphi 0, %s183
      %s201 = sphi 0, %s201
      %s203 = sphi 0, %s201
      %s204 = sphi 0, %s203
      %s218 = sphi 0, %s204
      %s224 = sphi 0, %s226
      %s227 = sphi 0, %s224
      %s228 = sphi 0, %s227
      %s244 = sphi 0, %s228
    $region4: #{tpu_custom_call.1} parent=1 // loop_header_branch
      %18 = sbr.rel (%p16) target = $region8
    $region5: #{tpu_custom_call.1} parent=1 // loop_body
      %s20 = ssub.s32 %s15, 1
      %s21 = ssub.s32 %s15, 2
      %s22 = sadd.s32 %s15, 1
      %s23 = ssub.s32 %s15, %s22
      %p24 = scmp.eq.s32.totalorder %s23, 0
      %s26 = sadd.s32 %s25, 1
      %s27 = scalar_select %p24, %s25, %s26
      %p30 = pneg %p24
      %p31 = scmp.eq.s32.totalorder %s15, 1
      %p32 = por %p30, %p31
      %p33 = scmp.ne.s32.totalorder %s25, %s28
      %p34 = scmp.eq.s32.totalorder %s15, 0
      %p35 = por %p33, %p34
      %p36 = scmp.ne.s32.totalorder %s25, %s28
      %p37 = scmp.eq.s32.totalorder %s20, 1
      %p38 = por %p36, %p37
      %p39 = scmp.ne.s32.totalorder %s28, %s29
      %p40 = scmp.eq.s32.totalorder %s20, 0
      %p41 = por %p39, %p40
      %p42 = scmp.ne.s32.totalorder %s28, %s29
      %p43 = scmp.eq.s32.totalorder %s21, 1
      %p44 = por %p42, %p43
      %p46 = scmp.ne.s32.totalorder %s29, %s45
      %p47 = scmp.eq.s32.totalorder %s21, 0
      %p48 = por %p46, %p47
      %s49 = ssub.s32 %s15, %s22
      %p50 = scmp.eq.s32.totalorder %s49, 0
      %s52 = sadd.s32 %s51, 1
      %s53 = scalar_select %p50, %s51, %s52
      %p56 = pneg %p50
      %p57 = scmp.eq.s32.totalorder %s15, 1
      %p58 = por %p56, %p57
      %p59 = scmp.ne.s32.totalorder %s51, %s54
      %p60 = scmp.eq.s32.totalorder %s15, 0
      %p61 = por %p59, %p60
      %p62 = scmp.ne.s32.totalorder %s51, %s54
      %p63 = scmp.eq.s32.totalorder %s20, 1
      %p64 = por %p62, %p63
      %p65 = scmp.ne.s32.totalorder %s54, %s55
      %p66 = scmp.eq.s32.totalorder %s20, 0
      %p67 = por %p65, %p66
      %p68 = scmp.ne.s32.totalorder %s54, %s55
      %p69 = scmp.eq.s32.totalorder %s21, 1
      %p70 = por %p68, %p69
      %p72 = scmp.ne.s32.totalorder %s55, %s71
      %p73 = scmp.eq.s32.totalorder %s21, 0
      %p74 = por %p72, %p73
      %s76 = sadd.s32 %s75, 1
      %p79 = scmp.eq.s32.totalorder %s15, 1
      %p80 = scmp.ne.s32.totalorder %s75, %s77
      %p81 = scmp.eq.s32.totalorder %s15, 0
      %p82 = por %p80, %p81
      %p83 = scmp.ne.s32.totalorder %s75, %s77
      %p84 = scmp.eq.s32.totalorder %s20, 1
      %p85 = por %p83, %p84
      %p86 = scmp.ne.s32.totalorder %s77, %s78
      %p87 = scmp.eq.s32.totalorder %s20, 0
      %p88 = por %p86, %p87
      %p89 = scmp.ne.s32.totalorder %s77, %s78
      %p90 = scmp.eq.s32.totalorder %s21, 1
      %p91 = por %p89, %p90
      %p93 = scmp.ne.s32.totalorder %s78, %s92
      %p94 = scmp.eq.s32.totalorder %s21, 0
      %p95 = por %p93, %p94
      %s97 = sadd.s32 %s96, 1
      %p100 = scmp.eq.s32.totalorder %s15, 1
      %p101 = scmp.ne.s32.totalorder %s96, %s98
      %p102 = scmp.eq.s32.totalorder %s15, 0
      %p103 = por %p101, %p102
      %p104 = scmp.ne.s32.totalorder %s96, %s98
      %p105 = scmp.eq.s32.totalorder %s20, 1
      %p106 = por %p104, %p105
      %p107 = scmp.ne.s32.totalorder %s98, %s99
      %p108 = scmp.eq.s32.totalorder %s20, 0
      %p109 = por %p107, %p108
      %p110 = scmp.ne.s32.totalorder %s98, %s99
      %p111 = scmp.eq.s32.totalorder %s21, 1
      %p112 = por %p110, %p111
      %p114 = scmp.ne.s32.totalorder %s99, %s113
      %p115 = scmp.eq.s32.totalorder %s21, 0
      %p116 = por %p114, %p115
      %s118 = sadd.s32 %s117, 1
      %p121 = scmp.eq.s32.totalorder %s15, 1
      %p122 = scmp.ne.s32.totalorder %s117, %s119
      %p123 = scmp.eq.s32.totalorder %s15, 0
      %p124 = por %p122, %p123
      %p125 = scmp.ne.s32.totalorder %s117, %s119
      %p126 = scmp.eq.s32.totalorder %s20, 1
      %p127 = por %p125, %p126
      %p128 = scmp.ne.s32.totalorder %s119, %s120
      %p129 = scmp.eq.s32.totalorder %s20, 0
      %p130 = por %p128, %p129
      %p131 = scmp.ne.s32.totalorder %s119, %s120
      %p132 = scmp.eq.s32.totalorder %s21, 1
      %p133 = por %p131, %p132
      %p135 = scmp.ne.s32.totalorder %s120, %s134
      %p136 = scmp.eq.s32.totalorder %s21, 0
      %p137 = por %p135, %p136
      %s139 = sadd.s32 %s138, 1
      %p142 = scmp.eq.s32.totalorder %s15, 1
      %p143 = scmp.ne.s32.totalorder %s138, %s140
      %p144 = scmp.eq.s32.totalorder %s15, 0
      %p145 = por %p143, %p144
      %p146 = scmp.ne.s32.totalorder %s138, %s140
      %p147 = scmp.eq.s32.totalorder %s20, 1
      %p148 = por %p146, %p147
      %p149 = scmp.ne.s32.totalorder %s140, %s141
      %p150 = scmp.eq.s32.totalorder %s20, 0
      %p151 = por %p149, %p150
      %p152 = scmp.ne.s32.totalorder %s140, %s141
      %p153 = scmp.eq.s32.totalorder %s21, 1
      %p154 = por %p152, %p153
      %p156 = scmp.ne.s32.totalorder %s141, %s155
      %p157 = scmp.eq.s32.totalorder %s21, 0
      %p158 = por %p156, %p157
      %s160 = sadd.s32 %s159, 1
      %p163 = scmp.eq.s32.totalorder %s15, 1
      %p164 = scmp.ne.s32.totalorder %s159, %s161
      %p165 = scmp.eq.s32.totalorder %s15, 0
      %p166 = por %p164, %p165
      %p167 = scmp.ne.s32.totalorder %s159, %s161
      %p168 = scmp.eq.s32.totalorder %s20, 1
      %p169 = por %p167, %p168
      %p170 = scmp.ne.s32.totalorder %s161, %s162
      %p171 = scmp.eq.s32.totalorder %s20, 0
      %p172 = por %p170, %p171
      %p173 = scmp.ne.s32.totalorder %s161, %s162
      %p174 = scmp.eq.s32.totalorder %s21, 1
      %p175 = por %p173, %p174
      %p177 = scmp.ne.s32.totalorder %s162, %s176
      %p178 = scmp.eq.s32.totalorder %s21, 0
      %p179 = por %p177, %p178
      %s181 = sadd.s32 %s180, 1
      %p184 = scmp.eq.s32.totalorder %s15, 1
      %p185 = scmp.ne.s32.totalorder %s180, %s182
      %p186 = scmp.eq.s32.totalorder %s15, 0
      %p187 = por %p185, %p186
      %p188 = scmp.ne.s32.totalorder %s180, %s182
      %p189 = scmp.eq.s32.totalorder %s20, 1
      %p190 = por %p188, %p189
      %p191 = scmp.ne.s32.totalorder %s182, %s183
      %p192 = scmp.eq.s32.totalorder %s20, 0
      %p193 = por %p191, %p192
      %p194 = scmp.ne.s32.totalorder %s182, %s183
      %p195 = scmp.eq.s32.totalorder %s21, 1
      %p196 = por %p194, %p195
      %p198 = scmp.ne.s32.totalorder %s183, %s197
      %p199 = scmp.eq.s32.totalorder %s21, 0
      %p200 = por %p198, %p199
      %s202 = sadd.s32 %s201, 1
      %p205 = scmp.eq.s32.totalorder %s15, 1
      %p206 = scmp.ne.s32.totalorder %s201, %s203
      %p207 = scmp.eq.s32.totalorder %s15, 0
      %p208 = por %p206, %p207
      %p209 = scmp.ne.s32.totalorder %s201, %s203
      %p210 = scmp.eq.s32.totalorder %s20, 1
      %p211 = por %p209, %p210
      %p212 = scmp.ne.s32.totalorder %s203, %s204
      %p213 = scmp.eq.s32.totalorder %s20, 0
      %p214 = por %p212, %p213
      %p215 = scmp.ne.s32.totalorder %s203, %s204
      %p216 = scmp.eq.s32.totalorder %s21, 1
      %p217 = por %p215, %p216
      %p219 = scmp.ne.s32.totalorder %s204, %s218
      %p220 = scmp.eq.s32.totalorder %s21, 0
      %p221 = por %p219, %p220
      %s222 = ssub.s32 %s15, %s22
      %p223 = scmp.eq.s32.totalorder %s222, 0
      %s225 = sadd.s32 %s224, 1
      %s226 = scalar_select %p223, %s224, %s225
      %p229 = pneg %p223
      %p230 = scmp.eq.s32.totalorder %s15, 1
      %p231 = por %p229, %p230
      %p232 = scmp.ne.s32.totalorder %s224, %s227
      %p233 = scmp.eq.s32.totalorder %s15, 0
      %p234 = por %p232, %p233
      %p235 = scmp.ne.s32.totalorder %s224, %s227
      %p236 = scmp.eq.s32.totalorder %s20, 1
      %p237 = por %p235, %p236
      %p238 = scmp.ne.s32.totalorder %s227, %s228
      %p239 = scmp.eq.s32.totalorder %s20, 0
      %p240 = por %p238, %p239
      %p241 = scmp.ne.s32.totalorder %s227, %s228
      %p242 = scmp.eq.s32.totalorder %s21, 1
      %p243 = por %p241, %p242
      %p245 = scmp.ne.s32.totalorder %s228, %s244
      %p246 = scmp.eq.s32.totalorder %s21, 0
      %p247 = por %p245, %p246
      %p248 = scmp.le.s32.totalorder 1, %s15
      %p249 = scmp.lt.s32.totalorder %s15, 3
      %p250 = pnand %p248, %p249
      %p251 = pneg %p250
      // Predicated region
      $region9: #{tpu_custom_call.1} parent=5 // pred_check
        _
      $region10: #{tpu_custom_call.1} parent=5 // pred_check_branch
        %253 = sbr.rel (%p250) target = $region12
      $region11: #{tpu_custom_call.1} parent=5 // pred_region
        %s254 = ssub.s32 %s15, 1
        // Predicated region
        $region13: #{tpu_custom_call.1} parent=11 // pred_check
          %p255 = pneg %p88
        $region14: #{tpu_custom_call.1} parent=11 // pred_check_branch
          %257 = sbr.rel (%p255) target = $region16
        $region15: #{tpu_custom_call.1} parent=11 // pred_region
          _
        $region16: #{tpu_custom_call.1} parent=11 // pred_fallthru
          _
        // Predicated region
        $region17: #{tpu_custom_call.1} parent=11 // pred_check
          %p258 = pneg %p109
        $region18: #{tpu_custom_call.1} parent=11 // pred_check_branch
          %260 = sbr.rel (%p258) target = $region20
        $region19: #{tpu_custom_call.1} parent=11 // pred_region
          _
        $region20: #{tpu_custom_call.1} parent=11 // pred_fallthru
          _
        // Predicated region
        $region21: #{tpu_custom_call.1} parent=11 // pred_check
          %p261 = pneg %p130
        $region22: #{tpu_custom_call.1} parent=11 // pred_check_branch
          %263 = sbr.rel (%p261) target = $region24
        $region23: #{tpu_custom_call.1} parent=11 // pred_region
          _
        $region24: #{tpu_custom_call.1} parent=11 // pred_fallthru
          _
        // Predicated region
        $region25: #{tpu_custom_call.1} parent=11 // pred_check
          %p264 = pneg %p151
        $region26: #{tpu_custom_call.1} parent=11 // pred_check_branch
          %266 = sbr.rel (%p264) target = $region28
        $region27: #{tpu_custom_call.1} parent=11 // pred_region
          _
        $region28: #{tpu_custom_call.1} parent=11 // pred_fallthru
          _
        // Predicated region
        $region29: #{tpu_custom_call.1} parent=11 // pred_check
          %p267 = pneg %p172
        $region30: #{tpu_custom_call.1} parent=11 // pred_check_branch
          %269 = sbr.rel (%p267) target = $region32
        $region31: #{tpu_custom_call.1} parent=11 // pred_region
          _
        $region32: #{tpu_custom_call.1} parent=11 // pred_fallthru
          _
        // Predicated region
        $region33: #{tpu_custom_call.1} parent=11 // pred_check
          %p270 = pneg %p193
        $region34: #{tpu_custom_call.1} parent=11 // pred_check_branch
          %272 = sbr.rel (%p270) target = $region36
        $region35: #{tpu_custom_call.1} parent=11 // pred_region
          _
        $region36: #{tpu_custom_call.1} parent=11 // pred_fallthru
          _
        // Predicated region
        $region37: #{tpu_custom_call.1} parent=11 // pred_check
          %p273 = pneg %p214
        $region38: #{tpu_custom_call.1} parent=11 // pred_check_branch
          %275 = sbr.rel (%p273) target = $region40
        $region39: #{tpu_custom_call.1} parent=11 // pred_region
          _
        $region40: #{tpu_custom_call.1} parent=11 // pred_fallthru
          _
      $region12: #{tpu_custom_call.1} parent=5 // pred_fallthru
        _
      %p276 = scmp.lt.s32.totalorder %s15, 2
      // Predicated region
      $region41: #{tpu_custom_call.1} parent=5 // pred_check
        %p277 = pneg %p276
      $region42: #{tpu_custom_call.1} parent=5 // pred_check_branch
        %279 = sbr.rel (%p277) target = $region44
      $region43: #{tpu_custom_call.1} parent=5 // pred_region
        // Predicated region
        $region45: #{tpu_custom_call.1} parent=43 // pred_check
          %p280 = pneg %p35
        $region46: #{tpu_custom_call.1} parent=43 // pred_check_branch
          %282 = sbr.rel (%p280) target = $region48
        $region47: #{tpu_custom_call.1} parent=43 // pred_region
          %s283 = smul.u32 8, %s15
          %p284 = scmp.lt.s32.totalorder %s283, 15
          %s285 = scalar_select %p284, %s283, 15
          %s286 = smul.addr %s285, 4
          %s287 = scalar_lea.vmem %s0, %s286
          %s288 = smul.u32 8, %s15
        $region48: #{tpu_custom_call.1} parent=43 // pred_fallthru
          _
        // Predicated region
        $region49: #{tpu_custom_call.1} parent=43 // pred_check
          %p289 = pneg %p61
        $region50: #{tpu_custom_call.1} parent=43 // pred_check_branch
          %291 = sbr.rel (%p289) target = $region52
        $region51: #{tpu_custom_call.1} parent=43 // pred_region
          %s292 = sand.u32 %s51, 1
          %s293 = sand.u32 %s51, 1
          %s294 = smul.addr %s293, 96
          %s295 = scalar_lea.vmem [#allocation2], %s294
          %s296 = smul.u32 8, %s15
          %s297 = smul.addr %s296, 4
          %s298 = scalar_lea.vmem %s1, %s297
          // Predicated region
          $region53: #{tpu_custom_call.1} parent=51 // pred_check
            _
          $region54: #{tpu_custom_call.1} parent=51 // pred_check_branch
            %300 = sbr.rel (0) target = $region56
          $region55: #{tpu_custom_call.1} parent=51 // pred_region
            // Predicated region
            $region57: #{tpu_custom_call.1} parent=55 // pred_check
              _
            $region58: #{tpu_custom_call.1} parent=55 // pred_check_branch
              %302 = sbr.rel target = $region60
            $region59: #{tpu_custom_call.1} parent=55 // pred_region
              // Predicated region
              $region72: #{tpu_custom_call.1} parent=59 // pred_check
                _
              $region73: #{tpu_custom_call.1} parent=59 // pred_check_branch
                %364 = sbr.rel (0) target = $region75
              $region74: #{tpu_custom_call.1} parent=59 // pred_region
                loop: start=0, step=1, limit=1
                $region76: #{tpu_custom_call.1} parent=74 // loop_pre_header
                  _
                $region77: #{tpu_custom_call.1} parent=74 // loop_header
                  %s366 = sphi 0, %s370
                  %p367 = scmp.ge.s32.totalorder %s366, 1
                  %s371 = sphi %s298, %s298
                  %s372 = sphi %s295, %s295
                $region78: #{tpu_custom_call.1} parent=74 // loop_header_branch
                  %369 = sbr.rel (%p367) target = $region82
                $region79: #{tpu_custom_call.1} parent=74 // loop_body
                  _
                $region80: #{tpu_custom_call.1} parent=74 // loop_footer
                  %s370 = sadd.s32 1, %s366
                $region81: #{tpu_custom_call.1} parent=74 // loop_footer_branch
                  %365 = sbr.rel target = $region77
                $region82: #{tpu_custom_call.1} parent=74 // loop_exit
                  _
                %s374 = ssub.s32 16, 1
                loop: start=0, step=1, limit=1
                $region83: #{tpu_custom_call.1} parent=74 // loop_pre_header
                  _
                $region84: #{tpu_custom_call.1} parent=74 // loop_header
                  %s376 = sphi 0, %s380
                  %p377 = scmp.ge.s32.totalorder %s376, 1
                  %s381 = sphi %s298, %s298
                  %s382 = sphi %s295, %s295
                $region85: #{tpu_custom_call.1} parent=74 // loop_header_branch
                  %379 = sbr.rel (%p377) target = $region89
                $region86: #{tpu_custom_call.1} parent=74 // loop_body
                  %v383 = vld [vmem:[%s381] sm:%s374]
                  %384 = vst [vmem:[%s382] sm:%s374] %v383
                  %v385 = vld [vmem:[%s381 + $0x4] sm:%s374]
                  %386 = vst [vmem:[%s382 + $0x4] sm:%s374] %v385
                  %v387 = vld [vmem:[%s381 + $0x8] sm:%s374]
                  %388 = vst [vmem:[%s382 + $0x8] sm:%s374] %v387
                  %v389 = vld [vmem:[%s381 + $0xc] sm:%s374]
                  %390 = vst [vmem:[%s382 + $0xc] sm:%s374] %v389
                  %v391 = vld [vmem:[%s381 + $0x10] sm:%s374]
                  %392 = vst [vmem:[%s382 + $0x10] sm:%s374] %v391
                  %v393 = vld [vmem:[%s381 + $0x14] sm:%s374]
                  %394 = vst [vmem:[%s382 + $0x14] sm:%s374] %v393
                  %v395 = vld [vmem:[%s381 + $0x18] sm:%s374]
                  %396 = vst [vmem:[%s382 + $0x18] sm:%s374] %v395
                  %v397 = vld [vmem:[%s381 + $0x1c] sm:%s374]
                  %398 = vst [vmem:[%s382 + $0x1c] sm:%s374] %v397
                  %v399 = vld [vmem:[%s381 + $0x40] sm:%s374]
                  %400 = vst [vmem:[%s382 + $0x20] sm:%s374] %v399
                  %v401 = vld [vmem:[%s381 + $0x44] sm:%s374]
                  %402 = vst [vmem:[%s382 + $0x24] sm:%s374] %v401
                  %v403 = vld [vmem:[%s381 + $0x48] sm:%s374]
                  %404 = vst [vmem:[%s382 + $0x28] sm:%s374] %v403
                  %v405 = vld [vmem:[%s381 + $0x4c] sm:%s374]
                  %406 = vst [vmem:[%s382 + $0x2c] sm:%s374] %v405
                  %v407 = vld [vmem:[%s381 + $0x50] sm:%s374]
                  %408 = vst [vmem:[%s382 + $0x30] sm:%s374] %v407
                  %v409 = vld [vmem:[%s381 + $0x54] sm:%s374]
                  %410 = vst [vmem:[%s382 + $0x34] sm:%s374] %v409
                  %v411 = vld [vmem:[%s381 + $0x58] sm:%s374]
                  %412 = vst [vmem:[%s382 + $0x38] sm:%s374] %v411
                  %v413 = vld [vmem:[%s381 + $0x5c] sm:%s374]
                  %414 = vst [vmem:[%s382 + $0x3c] sm:%s374] %v413
                  %v415 = vld [vmem:[%s381 + $0x80] sm:%s374]
                  %416 = vst [vmem:[%s382 + $0x40] sm:%s374] %v415
                  %v417 = vld [vmem:[%s381 + $0x84] sm:%s374]
                  %418 = vst [vmem:[%s382 + $0x44] sm:%s374] %v417
                  %v419 = vld [vmem:[%s381 + $0x88] sm:%s374]
                  %420 = vst [vmem:[%s382 + $0x48] sm:%s374] %v419
                  %v421 = vld [vmem:[%s381 + $0x8c] sm:%s374]
                  %422 = vst [vmem:[%s382 + $0x4c] sm:%s374] %v421
                  %v423 = vld [vmem:[%s381 + $0x90] sm:%s374]
                  %424 = vst [vmem:[%s382 + $0x50] sm:%s374] %v423
                  %v425 = vld [vmem:[%s381 + $0x94] sm:%s374]
                  %426 = vst [vmem:[%s382 + $0x54] sm:%s374] %v425
                  %v427 = vld [vmem:[%s381 + $0x98] sm:%s374]
                  %428 = vst [vmem:[%s382 + $0x58] sm:%s374] %v427
                  %v429 = vld [vmem:[%s381 + $0x9c] sm:%s374]
                  %430 = vst [vmem:[%s382 + $0x5c] sm:%s374] %v429
                $region87: #{tpu_custom_call.1} parent=74 // loop_footer
                  %s380 = sadd.s32 1, %s376
                $region88: #{tpu_custom_call.1} parent=74 // loop_footer_branch
                  %375 = sbr.rel target = $region84
                $region89: #{tpu_custom_call.1} parent=74 // loop_exit
                  _
              $region75: #{tpu_custom_call.1} parent=59 // pred_fallthru
                _
            $region60: #{tpu_custom_call.1} parent=55 // pred_fallthru
              _
            // Predicated region
            $region61: #{tpu_custom_call.1} parent=55 // pred_check
              _
            $region62: #{tpu_custom_call.1} parent=55 // pred_check_branch
              %304 = sbr.rel (0) target = $region64
            $region63: #{tpu_custom_call.1} parent=55 // pred_region
              %s306 = ssub.s32 16, 1
              loop: start=0, step=1, limit=1
              $region65: #{tpu_custom_call.1} parent=63 // loop_pre_header
                _
              $region66: #{tpu_custom_call.1} parent=63 // loop_header
                %s308 = sphi 0, %s312
                %p309 = scmp.ge.s32.totalorder %s308, 1
                %s313 = sphi %s298, %s298
                %s314 = sphi %s295, %s295
              $region67: #{tpu_custom_call.1} parent=63 // loop_header_branch
                %311 = sbr.rel (%p309) target = $region71
              $region68: #{tpu_custom_call.1} parent=63 // loop_body
                %v315 = vld [vmem:[%s313] sm:%s306]
                %316 = vst [vmem:[%s314] sm:%s306] %v315
                %v317 = vld [vmem:[%s313 + $0x4] sm:%s306]
                %318 = vst [vmem:[%s314 + $0x4] sm:%s306] %v317
                %v319 = vld [vmem:[%s313 + $0x8] sm:%s306]
                %320 = vst [vmem:[%s314 + $0x8] sm:%s306] %v319
                %v321 = vld [vmem:[%s313 + $0xc] sm:%s306]
                %322 = vst [vmem:[%s314 + $0xc] sm:%s306] %v321
                %v323 = vld [vmem:[%s313 + $0x10] sm:%s306]
                %324 = vst [vmem:[%s314 + $0x10] sm:%s306] %v323
                %v325 = vld [vmem:[%s313 + $0x14] sm:%s306]
                %326 = vst [vmem:[%s314 + $0x14] sm:%s306] %v325
                %v327 = vld [vmem:[%s313 + $0x18] sm:%s306]
                %328 = vst [vmem:[%s314 + $0x18] sm:%s306] %v327
                %v329 = vld [vmem:[%s313 + $0x1c] sm:%s306]
                %330 = vst [vmem:[%s314 + $0x1c] sm:%s306] %v329
                %v331 = vld [vmem:[%s313 + $0x40] sm:%s306]
                %332 = vst [vmem:[%s314 + $0x20] sm:%s306] %v331
                %v333 = vld [vmem:[%s313 + $0x44] sm:%s306]
                %334 = vst [vmem:[%s314 + $0x24] sm:%s306] %v333
                %v335 = vld [vmem:[%s313 + $0x48] sm:%s306]
                %336 = vst [vmem:[%s314 + $0x28] sm:%s306] %v335
                %v337 = vld [vmem:[%s313 + $0x4c] sm:%s306]
                %338 = vst [vmem:[%s314 + $0x2c] sm:%s306] %v337
                %v339 = vld [vmem:[%s313 + $0x50] sm:%s306]
                %340 = vst [vmem:[%s314 + $0x30] sm:%s306] %v339
                %v341 = vld [vmem:[%s313 + $0x54] sm:%s306]
                %342 = vst [vmem:[%s314 + $0x34] sm:%s306] %v341
                %v343 = vld [vmem:[%s313 + $0x58] sm:%s306]
                %344 = vst [vmem:[%s314 + $0x38] sm:%s306] %v343
                %v345 = vld [vmem:[%s313 + $0x5c] sm:%s306]
                %346 = vst [vmem:[%s314 + $0x3c] sm:%s306] %v345
                %v347 = vld [vmem:[%s313 + $0x80] sm:%s306]
                %348 = vst [vmem:[%s314 + $0x40] sm:%s306] %v347
                %v349 = vld [vmem:[%s313 + $0x84] sm:%s306]
                %350 = vst [vmem:[%s314 + $0x44] sm:%s306] %v349
                %v351 = vld [vmem:[%s313 + $0x88] sm:%s306]
                %352 = vst [vmem:[%s314 + $0x48] sm:%s306] %v351
                %v353 = vld [vmem:[%s313 + $0x8c] sm:%s306]
                %354 = vst [vmem:[%s314 + $0x4c] sm:%s306] %v353
                %v355 = vld [vmem:[%s313 + $0x90] sm:%s306]
                %356 = vst [vmem:[%s314 + $0x50] sm:%s306] %v355
                %v357 = vld [vmem:[%s313 + $0x94] sm:%s306]
                %358 = vst [vmem:[%s314 + $0x54] sm:%s306] %v357
                %v359 = vld [vmem:[%s313 + $0x98] sm:%s306]
                %360 = vst [vmem:[%s314 + $0x58] sm:%s306] %v359
                %v361 = vld [vmem:[%s313 + $0x9c] sm:%s306]
                %362 = vst [vmem:[%s314 + $0x5c] sm:%s306] %v361
              $region69: #{tpu_custom_call.1} parent=63 // loop_footer
                %s312 = sadd.s32 1, %s308
              $region70: #{tpu_custom_call.1} parent=63 // loop_footer_branch
                %307 = sbr.rel target = $region66
              $region71: #{tpu_custom_call.1} parent=63 // loop_exit
                _
            $region64: #{tpu_custom_call.1} parent=55 // pred_fallthru
              _
          $region56: #{tpu_custom_call.1} parent=51 // pred_fallthru
            _
          %431 = vnop
        $region52: #{tpu_custom_call.1} parent=43 // pred_fallthru
          _
      $region44: #{tpu_custom_call.1} parent=5 // pred_fallthru
        _
      %p432 = scmp.le.s32.totalorder 1, %s15
      %p433 = scmp.lt.s32.totalorder %s15, 3
      %p434 = pnand %p432, %p433
      %p435 = pneg %p434
      // Predicated region
      $region90: #{tpu_custom_call.1} parent=5 // pred_check
        _
      $region91: #{tpu_custom_call.1} parent=5 // pred_check_branch
        %437 = sbr.rel (%p434) target = $region93
      $region92: #{tpu_custom_call.1} parent=5 // pred_region
        %s438 = ssub.s32 %s15, 1
        %s439 = sand.u32 %s54, 1
        %s440 = sand.u32 %s54, 1
        %s441 = smul.addr %s440, 96
        %s442 = scalar_lea.vmem [#allocation2], %s441
        // Predicated region
        $region94: #{tpu_custom_call.1} parent=92 // pred_check
          %p443 = pneg %p67
        $region95: #{tpu_custom_call.1} parent=92 // pred_check_branch
          %445 = sbr.rel (%p443) target = $region97
        $region96: #{tpu_custom_call.1} parent=92 // pred_region
          _
        $region97: #{tpu_custom_call.1} parent=92 // pred_fallthru
          _
        %s446 = smul.u32 8, %s20
        %p447 = scmp.lt.s32.totalorder %s446, 15
        %s448 = scalar_select %p447, %s446, 15
        %s449 = smul.addr %s448, 4
        %s450 = scalar_lea.vmem %s0, %s449
        %p451 = pneg %p41
        %p452 = pneg %p38
        %s453 = sand.u32 %s54, 1
        %s454 = sand.u32 %s54, 1
        %s455 = smul.addr %s454, 96
        %s456 = scalar_lea.vmem [#allocation2], %s455
        %p457 = pneg %p67
        %p458 = pneg %p64
        %p459 = pneg %p88
        %p460 = pneg %p85
        %p461 = pneg %p109
        %p462 = pneg %p106
        %p463 = pneg %p130
        %p464 = pneg %p127
        %p465 = pneg %p151
        %p466 = pneg %p148
        %p467 = pneg %p172
        %p468 = pneg %p169
        %p469 = pneg %p193
        %p470 = pneg %p190
        %p471 = pneg %p214
        %p472 = pneg %p211
        %p473 = pneg %p240
        %p474 = pneg %p237
        %s475 = smul.u32 8, %s20
        %p476 = scmp.lt.s32.totalorder %s475, 15
        %s477 = scalar_select %p476, %s475, 15
        %s478 = smul.addr %s477, 8
        %s479 = scalar_lea.vmem %s9, %s478
        %s480 = smul.u32 8, %s20
        %p481 = scmp.lt.s32.totalorder %s480, 15
        %s482 = scalar_select %p481, %s480, 15
        %s483 = smul.addr %s482, 4
        %s484 = scalar_lea.vmem %s0, %s483
        %s485 = smul.u32 8, %s20
        %s486 = smul.u32 8, %s20
        %s487 = smul.u32 8, %s20
        %p488 = scmp.lt.s32.totalorder %s487, 15
        %s489 = scalar_select %p488, %s487, 15
        %s490 = smul.addr %s489, 8
        %s491 = scalar_lea.vmem %s9, %s490
        %s492 = smul.u32 8, %s20
        %v494 = vld [vmem:[%s8] sm:$0xf]
        %v495 = vld [vmem:[%s484] sm:$0xf]
        %v496 = vld [vmem:[%s484 + $0x4] sm:$0xf]
        %v497 = vld [vmem:[%s484 + $0x8] sm:$0xf]
        %v498 = vld [vmem:[%s484 + $0xc] sm:$0xf]
        %v499 = vld [vmem:[%s484 + $0x10] sm:$0xf]
        %v500 = vld [vmem:[%s484 + $0x14] sm:$0xf]
        %v501 = vld [vmem:[%s484 + $0x18] sm:$0xf]
        %v502 = vld [vmem:[%s484 + $0x1c] sm:$0xf]
        %v503 = vld [vmem:[%s4] sm:$0xf]
        %v504 = vld [vmem:[%s4 + $0x4] sm:$0xf]
        %v505 = vld [vmem:[%s4 + $0x8] sm:$0xf]
        %v506 = vld [vmem:[%s4 + $0xc] sm:$0xf]
        %v507 = vld [vmem:[%s5] sm:$0x1]
        %v509 = vlaneseq
        %v510 = vshrl.u32 %v509, 7
        %v511 = vsub.s32 0, %v510
        %v512 = vrot.slane %v507, %v511
        %v522 = vunpack.c.l.b16 %v495
        %v523 = vunpack.c.l.b16 %v496
        %v524 = vunpack.c.l.b16 %v497
        %v525 = vunpack.c.l.b16 %v498
        %v526 = vunpack.c.l.b16 %v499
        %v527 = vunpack.c.l.b16 %v500
        %v528 = vunpack.c.l.b16 %v501
        %v529 = vunpack.c.l.b16 %v502
        %v530 = vpack.c.b16 %v523, %v522
        %v531 = vpack.c.b16 %v525, %v524
        %v532 = vpack.c.b16 %v527, %v526
        %v533 = vpack.c.b16 %v529, %v528
        %v538 = vunpack.c.l.b16 %v503
        %v539 = vunpack.c.l.b16 %v504
        %v540 = vunpack.c.l.b16 %v505
        %v541 = vunpack.c.l.b16 %v506
        %v542 = vpack.c.b16 %v539, %v538
        %v543 = vpack.c.b16 %v541, %v540
        %vm546 = vcmask 261120
        %v548 = vsel %vm546, %v530, 0
        %v551 = vsel %vm546, %v531, 0
        %v554 = vsel %vm546, %v532, 0
        %v557 = vsel %vm546, %v533, 0
        %559 = vmatprep.subr.bf16.mxu0 0
        %560 = vmatpush1.bf16.msra.mxu0 0
        %561 = vmatprep.subr.bf16.mxu0 0
        %562 = vmatpush1.bf16.msra.mxu0 0
        %563 = vmatprep.subr.bf16.mxu0 0
        %564 = vmatpush1.bf16.msra.mxu0 0
        %565 = vmatprep.subr.bf16.mxu0 0
        %566 = vmatpush1.bf16.msra.mxu0 0
        %567 = vmatprep.subr.bf16.mxu0 0
        %568 = vmatpush1.bf16.msra.mxu0 0
        %569 = vmatprep.subr.bf16.mxu0 0
        %570 = vmatpush1.bf16.msra.mxu0 0
        %571 = vmatprep.subr.bf16.mxu0 0
        %572 = vmatpush1.bf16.msra.mxu0 %v543
        %573 = vmatprep.subr.bf16.mxu0 0
        %574 = vmatpush1.bf16.msra.mxu0 %v542
        %575 = vmatprep.subr.bf16.mxu0 0
        %576 = vmatpush2.bf16.msra.mxu0 0
        %577 = vmatprep.subr.bf16.mxu0 0
        %578 = vmatpush2.bf16.msra.mxu0 0
        %579 = vmatprep.subr.bf16.mxu0 0
        %580 = vmatpush2.bf16.msra.mxu0 0
        %581 = vmatprep.subr.bf16.mxu0 0
        %582 = vmatpush2.bf16.msra.mxu0 0
        %583 = vmatprep.subr.bf16.mxu0 0
        %584 = vmatpush2.bf16.msra.mxu0 0
        %585 = vmatprep.subr.bf16.mxu0 0
        %586 = vmatpush2.bf16.msra.mxu0 0
        %587 = vmatprep.subr.bf16.mxu0 0
        %588 = vmatpush2.bf16.msra.mxu0 0
        %589 = vmatprep.subr.bf16.mxu0 0
        %590 = vmatpush2.bf16.msra.mxu0 0
        %591 = vmatprep.mubr.bf16.mxu0 0
        %592 = vmatmul.mubr.bf16.gmra.mxu0 %v548
        %v593 = vpop.f32.mrf.mxu0
        %v594 = vadd.f32 %v512, %v593
        %v595 = vpop.f32.mrf.mxu0
        %v596 = vpop.f32.mrf.mxu0
        %v597 = vadd.f32 %v512, %v596
        %v598 = vpop.f32.mrf.mxu0
        %599 = vmatprep.mubr.bf16.mxu0 0
        %600 = vmatmul.mubr.bf16.gmra.mxu0 %v551
        %v601 = vpop.f32.mrf.mxu0
        %v602 = vadd.f32 %v512, %v601
        %v603 = vpop.f32.mrf.mxu0
        %v604 = vpop.f32.mrf.mxu0
        %v605 = vadd.f32 %v512, %v604
        %v606 = vpop.f32.mrf.mxu0
        %607 = vmatprep.mubr.bf16.mxu0 0
        %608 = vmatmul.mubr.bf16.gmra.mxu0 %v554
        %v609 = vpop.f32.mrf.mxu0
        %v610 = vadd.f32 %v512, %v609
        %v611 = vpop.f32.mrf.mxu0
        %v612 = vpop.f32.mrf.mxu0
        %v613 = vadd.f32 %v512, %v612
        %v614 = vpop.f32.mrf.mxu0
        %615 = vmatprep.mubr.bf16.mxu0 0
        %616 = vmatmul.mubr.bf16.gmra.mxu0 %v557
        %v617 = vpop.f32.mrf.mxu0
        %v618 = vadd.f32 %v512, %v617
        %v619 = vpop.f32.mrf.mxu0
        %v620 = vpop.f32.mrf.mxu0
        %v621 = vadd.f32 %v512, %v620
        %v622 = vpop.f32.mrf.mxu0
        %623 = vdwg.mxu0
        %v624 = vld [vmem:[%s442] sm:$0xf]
        %v625 = vld [vmem:[%s442 + $0x4] sm:$0xf]
        %v626 = vld [vmem:[%s442 + $0x8] sm:$0xf]
        %v627 = vld [vmem:[%s442 + $0xc] sm:$0xf]
        %v628 = vld [vmem:[%s442 + $0x10] sm:$0xf]
        %v629 = vld [vmem:[%s442 + $0x14] sm:$0xf]
        %v630 = vld [vmem:[%s442 + $0x18] sm:$0xf]
        %v631 = vld [vmem:[%s442 + $0x1c] sm:$0xf]
        %v632 = vld [vmem:[%s6] sm:$0xf]
        %v633 = vld [vmem:[%s6 + $0x4] sm:$0xf]
        %v634 = vld [vmem:[%s6 + $0x8] sm:$0xf]
        %v635 = vld [vmem:[%s6 + $0xc] sm:$0xf]
        %v644 = vunpack.c.l.b16 %v624
        %v645 = vunpack.c.l.b16 %v625
        %v646 = vunpack.c.l.b16 %v626
        %v647 = vunpack.c.l.b16 %v627
        %v648 = vunpack.c.l.b16 %v628
        %v649 = vunpack.c.l.b16 %v629
        %v650 = vunpack.c.l.b16 %v630
        %v651 = vunpack.c.l.b16 %v631
        %v652 = vpack.c.b16 %v645, %v644
        %v653 = vpack.c.b16 %v647, %v646
        %v654 = vpack.c.b16 %v649, %v648
        %v655 = vpack.c.b16 %v651, %v650
        %v660 = vunpack.c.l.b16 %v632
        %v661 = vunpack.c.l.b16 %v633
        %v662 = vunpack.c.l.b16 %v634
        %v663 = vunpack.c.l.b16 %v635
        %v664 = vpack.c.b16 %v661, %v660
        %v665 = vpack.c.b16 %v663, %v662
        %v669 = vsel %vm546, %v652, 0
        %v672 = vsel %vm546, %v653, 0
        %v675 = vsel %vm546, %v654, 0
        %v678 = vsel %vm546, %v655, 0
        %680 = vmatprep.subr.bf16.mxu0 0
        %681 = vmatpush1.bf16.msra.mxu0 0
        %682 = vmatprep.subr.bf16.mxu0 0
        %683 = vmatpush1.bf16.msra.mxu0 0
        %684 = vmatprep.subr.bf16.mxu0 0
        %685 = vmatpush1.bf16.msra.mxu0 0
        %686 = vmatprep.subr.bf16.mxu0 0
        %687 = vmatpush1.bf16.msra.mxu0 0
        %688 = vmatprep.subr.bf16.mxu0 0
        %689 = vmatpush1.bf16.msra.mxu0 0
        %690 = vmatprep.subr.bf16.mxu0 0
        %691 = vmatpush1.bf16.msra.mxu0 0
        %692 = vmatprep.subr.bf16.mxu0 0
        %693 = vmatpush1.bf16.msra.mxu0 %v665
        %694 = vmatprep.subr.bf16.mxu0 0
        %695 = vmatpush1.bf16.msra.mxu0 %v664
        %696 = vmatprep.subr.bf16.mxu0 0
        %697 = vmatpush2.bf16.msra.mxu0 0
        %698 = vmatprep.subr.bf16.mxu0 0
        %699 = vmatpush2.bf16.msra.mxu0 0
        %700 = vmatprep.subr.bf16.mxu0 0
        %701 = vmatpush2.bf16.msra.mxu0 0
        %702 = vmatprep.subr.bf16.mxu0 0
        %703 = vmatpush2.bf16.msra.mxu0 0
        %704 = vmatprep.subr.bf16.mxu0 0
        %705 = vmatpush2.bf16.msra.mxu0 0
        %706 = vmatprep.subr.bf16.mxu0 0
        %707 = vmatpush2.bf16.msra.mxu0 0
        %708 = vmatprep.subr.bf16.mxu0 0
        %709 = vmatpush2.bf16.msra.mxu0 0
        %710 = vmatprep.subr.bf16.mxu0 0
        %711 = vmatpush2.bf16.msra.mxu0 0
        %712 = vmatprep.mubr.bf16.mxu0 0
        %713 = vmatmul.mubr.bf16.gmra.mxu0 %v669
        %v714 = vpop.f32.mrf.mxu0
        %v715 = vadd.f32 0.0, %v714
        %v716 = vpop.f32.mrf.mxu0
        %v717 = vpop.f32.mrf.mxu0
        %v718 = vadd.f32 0.0, %v717
        %v719 = vpop.f32.mrf.mxu0
        %720 = vmatprep.mubr.bf16.mxu0 0
        %721 = vmatmul.mubr.bf16.gmra.mxu0 %v672
        %v722 = vpop.f32.mrf.mxu0
        %v723 = vadd.f32 0.0, %v722
        %v724 = vpop.f32.mrf.mxu0
        %v725 = vpop.f32.mrf.mxu0
        %v726 = vadd.f32 0.0, %v725
        %v727 = vpop.f32.mrf.mxu0
        %728 = vmatprep.mubr.bf16.mxu0 0
        %729 = vmatmul.mubr.bf16.gmra.mxu0 %v675
        %v730 = vpop.f32.mrf.mxu0
        %v731 = vadd.f32 0.0, %v730
        %v732 = vpop.f32.mrf.mxu0
        %v733 = vpop.f32.mrf.mxu0
        %v734 = vadd.f32 0.0, %v733
        %v735 = vpop.f32.mrf.mxu0
        %736 = vmatprep.mubr.bf16.mxu0 0
        %737 = vmatmul.mubr.bf16.gmra.mxu0 %v678
        %v738 = vpop.f32.mrf.mxu0
        %v739 = vadd.f32 0.0, %v738
        %v740 = vpop.f32.mrf.mxu0
        %v741 = vpop.f32.mrf.mxu0
        %v742 = vadd.f32 0.0, %v741
        %v743 = vpop.f32.mrf.mxu0
        %744 = vdwg.mxu0
        %v745 = vadd.f32 %v594, %v715
        %v746 = vadd.f32 %v597, %v718
        %v747 = vadd.f32 %v602, %v723
        %v748 = vadd.f32 %v605, %v726
        %v749 = vadd.f32 %v610, %v731
        %v750 = vadd.f32 %v613, %v734
        %v751 = vadd.f32 %v618, %v739
        %v752 = vadd.f32 %v621, %v742
        %v753 = vld [vmem:[%s7] sm:$0x1]
        %v755 = vlaneseq
        %v756 = vshrl.u32 %v755, 7
        %v757 = vsub.s32 0, %v756
        %v758 = vrot.slane %v753, %v757
        %v760 = vadd.f32 %v745, %v758
        %v761 = vadd.f32 %v746, %v758
        %v762 = vadd.f32 %v747, %v758
        %v763 = vadd.f32 %v748, %v758
        %v764 = vadd.f32 %v749, %v758
        %v765 = vadd.f32 %v750, %v758
        %v766 = vadd.f32 %v751, %v758
        %v767 = vadd.f32 %v752, %v758
        %v768 = vmul.f32 %v760, 0.2
        %v769 = vmul.f32 %v761, 0.2
        %v770 = vmul.f32 %v762, 0.2
        %v771 = vmul.f32 %v763, 0.2
        %v772 = vmul.f32 %v764, 0.2
        %v773 = vmul.f32 %v765, 0.2
        %v774 = vmul.f32 %v766, 0.2
        %v775 = vmul.f32 %v767, 0.2
        %v776 = vmax.f32 %v760, %v768
        %v777 = vmax.f32 %v761, %v769
        %v778 = vmax.f32 %v762, %v770
        %v779 = vmax.f32 %v763, %v771
        %v780 = vmax.f32 %v764, %v772
        %v781 = vmax.f32 %v765, %v773
        %v782 = vmax.f32 %v766, %v774
        %v783 = vmax.f32 %v767, %v775
        %s784 = scalar_lea.vmem %s442, 32 [#allocation2]
        %v785 = vld [vmem:[%s784] sm:$0xf]
        %v786 = vld [vmem:[%s784 + $0x4] sm:$0xf]
        %v787 = vld [vmem:[%s784 + $0x8] sm:$0xf]
        %v788 = vld [vmem:[%s784 + $0xc] sm:$0xf]
        %v789 = vld [vmem:[%s784 + $0x10] sm:$0xf]
        %v790 = vld [vmem:[%s784 + $0x14] sm:$0xf]
        %v791 = vld [vmem:[%s784 + $0x18] sm:$0xf]
        %v792 = vld [vmem:[%s784 + $0x1c] sm:$0xf]
        %s793 = scalar_lea.vmem %s6, 16
        %v794 = vld [vmem:[%s793] sm:$0xf]
        %v795 = vld [vmem:[%s793 + $0x4] sm:$0xf]
        %v796 = vld [vmem:[%s793 + $0x8] sm:$0xf]
        %v797 = vld [vmem:[%s793 + $0xc] sm:$0xf]
        %v806 = vunpack.c.l.b16 %v785
        %v807 = vunpack.c.l.b16 %v786
        %v808 = vunpack.c.l.b16 %v787
        %v809 = vunpack.c.l.b16 %v788
        %v810 = vunpack.c.l.b16 %v789
        %v811 = vunpack.c.l.b16 %v790
        %v812 = vunpack.c.l.b16 %v791
        %v813 = vunpack.c.l.b16 %v792
        %v814 = vpack.c.b16 %v807, %v806
        %v815 = vpack.c.b16 %v809, %v808
        %v816 = vpack.c.b16 %v811, %v810
        %v817 = vpack.c.b16 %v813, %v812
        %v822 = vunpack.c.l.b16 %v794
        %v823 = vunpack.c.l.b16 %v795
        %v824 = vunpack.c.l.b16 %v796
        %v825 = vunpack.c.l.b16 %v797
        %v826 = vpack.c.b16 %v823, %v822
        %v827 = vpack.c.b16 %v825, %v824
        %v831 = vsel %vm546, %v814, 0
        %v834 = vsel %vm546, %v815, 0
        %v837 = vsel %vm546, %v816, 0
        %v840 = vsel %vm546, %v817, 0
        %842 = vmatprep.subr.bf16.mxu0 0
        %843 = vmatpush1.bf16.msra.mxu0 0
        %844 = vmatprep.subr.bf16.mxu0 0
        %845 = vmatpush1.bf16.msra.mxu0 0
        %846 = vmatprep.subr.bf16.mxu0 0
        %847 = vmatpush1.bf16.msra.mxu0 0
        %848 = vmatprep.subr.bf16.mxu0 0
        %849 = vmatpush1.bf16.msra.mxu0 0
        %850 = vmatprep.subr.bf16.mxu0 0
        %851 = vmatpush1.bf16.msra.mxu0 0
        %852 = vmatprep.subr.bf16.mxu0 0
        %853 = vmatpush1.bf16.msra.mxu0 0
        %854 = vmatprep.subr.bf16.mxu0 0
        %855 = vmatpush1.bf16.msra.mxu0 %v827
        %856 = vmatprep.subr.bf16.mxu0 0
        %857 = vmatpush1.bf16.msra.mxu0 %v826
        %858 = vmatprep.subr.bf16.mxu0 0
        %859 = vmatpush2.bf16.msra.mxu0 0
        %860 = vmatprep.subr.bf16.mxu0 0
        %861 = vmatpush2.bf16.msra.mxu0 0
        %862 = vmatprep.subr.bf16.mxu0 0
        %863 = vmatpush2.bf16.msra.mxu0 0
        %864 = vmatprep.subr.bf16.mxu0 0
        %865 = vmatpush2.bf16.msra.mxu0 0
        %866 = vmatprep.subr.bf16.mxu0 0
        %867 = vmatpush2.bf16.msra.mxu0 0
        %868 = vmatprep.subr.bf16.mxu0 0
        %869 = vmatpush2.bf16.msra.mxu0 0
        %870 = vmatprep.subr.bf16.mxu0 0
        %871 = vmatpush2.bf16.msra.mxu0 0
        %872 = vmatprep.subr.bf16.mxu0 0
        %873 = vmatpush2.bf16.msra.mxu0 0
        %874 = vmatprep.mubr.bf16.mxu0 0
        %875 = vmatmul.mubr.bf16.gmra.mxu0 %v831
        %v876 = vpop.f32.mrf.mxu0
        %v877 = vadd.f32 0.0, %v876
        %v878 = vpop.f32.mrf.mxu0
        %v879 = vpop.f32.mrf.mxu0
        %v880 = vadd.f32 0.0, %v879
        %v881 = vpop.f32.mrf.mxu0
        %882 = vmatprep.mubr.bf16.mxu0 0
        %883 = vmatmul.mubr.bf16.gmra.mxu0 %v834
        %v884 = vpop.f32.mrf.mxu0
        %v885 = vadd.f32 0.0, %v884
        %v886 = vpop.f32.mrf.mxu0
        %v887 = vpop.f32.mrf.mxu0
        %v888 = vadd.f32 0.0, %v887
        %v889 = vpop.f32.mrf.mxu0
        %890 = vmatprep.mubr.bf16.mxu0 0
        %891 = vmatmul.mubr.bf16.gmra.mxu0 %v837
        %v892 = vpop.f32.mrf.mxu0
        %v893 = vadd.f32 0.0, %v892
        %v894 = vpop.f32.mrf.mxu0
        %v895 = vpop.f32.mrf.mxu0
        %v896 = vadd.f32 0.0, %v895
        %v897 = vpop.f32.mrf.mxu0
        %898 = vmatprep.mubr.bf16.mxu0 0
        %899 = vmatmul.mubr.bf16.gmra.mxu0 %v840
        %v900 = vpop.f32.mrf.mxu0
        %v901 = vadd.f32 0.0, %v900
        %v902 = vpop.f32.mrf.mxu0
        %v903 = vpop.f32.mrf.mxu0
        %v904 = vadd.f32 0.0, %v903
        %v905 = vpop.f32.mrf.mxu0
        %906 = vdwg.mxu0
        %v907 = vadd.f32 %v594, %v877
        %v908 = vadd.f32 %v597, %v880
        %v909 = vadd.f32 %v602, %v885
        %v910 = vadd.f32 %v605, %v888
        %v911 = vadd.f32 %v610, %v893
        %v912 = vadd.f32 %v613, %v896
        %v913 = vadd.f32 %v618, %v901
        %v914 = vadd.f32 %v621, %v904
        %s915 = scalar_lea.vmem %s7, 1
        %v916 = vld [vmem:[%s915] sm:$0x1]
        %v918 = vlaneseq
        %v919 = vshrl.u32 %v918, 7
        %v920 = vsub.s32 0, %v919
        %v921 = vrot.slane %v916, %v920
        %v923 = vadd.f32 %v907, %v921
        %v924 = vadd.f32 %v908, %v921
        %v925 = vadd.f32 %v909, %v921
        %v926 = vadd.f32 %v910, %v921
        %v927 = vadd.f32 %v911, %v921
        %v928 = vadd.f32 %v912, %v921
        %v929 = vadd.f32 %v913, %v921
        %v930 = vadd.f32 %v914, %v921
        %v931 = vmul.f32 %v923, 0.2
        %v932 = vmul.f32 %v924, 0.2
        %v933 = vmul.f32 %v925, 0.2
        %v934 = vmul.f32 %v926, 0.2
        %v935 = vmul.f32 %v927, 0.2
        %v936 = vmul.f32 %v928, 0.2
        %v937 = vmul.f32 %v929, 0.2
        %v938 = vmul.f32 %v930, 0.2
        %v939 = vmax.f32 %v923, %v931
        %v940 = vmax.f32 %v924, %v932
        %v941 = vmax.f32 %v925, %v933
        %v942 = vmax.f32 %v926, %v934
        %v943 = vmax.f32 %v927, %v935
        %v944 = vmax.f32 %v928, %v936
        %v945 = vmax.f32 %v929, %v937
        %v946 = vmax.f32 %v930, %v938
        %s947 = scalar_lea.vmem %s442, 64 [#allocation2]
        %v948 = vld [vmem:[%s947] sm:$0xf]
        %v949 = vld [vmem:[%s947 + $0x4] sm:$0xf]
        %v950 = vld [vmem:[%s947 + $0x8] sm:$0xf]
        %v951 = vld [vmem:[%s947 + $0xc] sm:$0xf]
        %v952 = vld [vmem:[%s947 + $0x10] sm:$0xf]
        %v953 = vld [vmem:[%s947 + $0x14] sm:$0xf]
        %v954 = vld [vmem:[%s947 + $0x18] sm:$0xf]
        %v955 = vld [vmem:[%s947 + $0x1c] sm:$0xf]
        %s956 = scalar_lea.vmem %s6, 32
        %v957 = vld [vmem:[%s956] sm:$0xf]
        %v958 = vld [vmem:[%s956 + $0x4] sm:$0xf]
        %v959 = vld [vmem:[%s956 + $0x8] sm:$0xf]
        %v960 = vld [vmem:[%s956 + $0xc] sm:$0xf]
        %v969 = vunpack.c.l.b16 %v948
        %v970 = vunpack.c.l.b16 %v949
        %v971 = vunpack.c.l.b16 %v950
        %v972 = vunpack.c.l.b16 %v951
        %v973 = vunpack.c.l.b16 %v952
        %v974 = vunpack.c.l.b16 %v953
        %v975 = vunpack.c.l.b16 %v954
        %v976 = vunpack.c.l.b16 %v955
        %v977 = vpack.c.b16 %v970, %v969
        %v978 = vpack.c.b16 %v972, %v971
        %v979 = vpack.c.b16 %v974, %v973
        %v980 = vpack.c.b16 %v976, %v975
        %v985 = vunpack.c.l.b16 %v957
        %v986 = vunpack.c.l.b16 %v958
        %v987 = vunpack.c.l.b16 %v959
        %v988 = vunpack.c.l.b16 %v960
        %v989 = vpack.c.b16 %v986, %v985
        %v990 = vpack.c.b16 %v988, %v987
        %v994 = vsel %vm546, %v977, 0
        %v997 = vsel %vm546, %v978, 0
        %v1000 = vsel %vm546, %v979, 0
        %v1003 = vsel %vm546, %v980, 0
        %1005 = vmatprep.subr.bf16.mxu0 0
        %1006 = vmatpush1.bf16.msra.mxu0 0
        %1007 = vmatprep.subr.bf16.mxu0 0
        %1008 = vmatpush1.bf16.msra.mxu0 0
        %1009 = vmatprep.subr.bf16.mxu0 0
        %1010 = vmatpush1.bf16.msra.mxu0 0
        %1011 = vmatprep.subr.bf16.mxu0 0
        %1012 = vmatpush1.bf16.msra.mxu0 0
        %1013 = vmatprep.subr.bf16.mxu0 0
        %1014 = vmatpush1.bf16.msra.mxu0 0
        %1015 = vmatprep.subr.bf16.mxu0 0
        %1016 = vmatpush1.bf16.msra.mxu0 0
        %1017 = vmatprep.subr.bf16.mxu0 0
        %1018 = vmatpush1.bf16.msra.mxu0 %v990
        %1019 = vmatprep.subr.bf16.mxu0 0
        %1020 = vmatpush1.bf16.msra.mxu0 %v989
        %1021 = vmatprep.subr.bf16.mxu0 0
        %1022 = vmatpush2.bf16.msra.mxu0 0
        %1023 = vmatprep.subr.bf16.mxu0 0
        %1024 = vmatpush2.bf16.msra.mxu0 0
        %1025 = vmatprep.subr.bf16.mxu0 0
        %1026 = vmatpush2.bf16.msra.mxu0 0
        %1027 = vmatprep.subr.bf16.mxu0 0
        %1028 = vmatpush2.bf16.msra.mxu0 0
        %1029 = vmatprep.subr.bf16.mxu0 0
        %1030 = vmatpush2.bf16.msra.mxu0 0
        %1031 = vmatprep.subr.bf16.mxu0 0
        %1032 = vmatpush2.bf16.msra.mxu0 0
        %1033 = vmatprep.subr.bf16.mxu0 0
        %1034 = vmatpush2.bf16.msra.mxu0 0
        %1035 = vmatprep.subr.bf16.mxu0 0
        %1036 = vmatpush2.bf16.msra.mxu0 0
        %1037 = vmatprep.mubr.bf16.mxu0 0
        %1038 = vmatmul.mubr.bf16.gmra.mxu0 %v994
        %v1039 = vpop.f32.mrf.mxu0
        %v1040 = vadd.f32 0.0, %v1039
        %v1041 = vpop.f32.mrf.mxu0
        %v1042 = vpop.f32.mrf.mxu0
        %v1043 = vadd.f32 0.0, %v1042
        %v1044 = vpop.f32.mrf.mxu0
        %1045 = vmatprep.mubr.bf16.mxu0 0
        %1046 = vmatmul.mubr.bf16.gmra.mxu0 %v997
        %v1047 = vpop.f32.mrf.mxu0
        %v1048 = vadd.f32 0.0, %v1047
        %v1049 = vpop.f32.mrf.mxu0
        %v1050 = vpop.f32.mrf.mxu0
        %v1051 = vadd.f32 0.0, %v1050
        %v1052 = vpop.f32.mrf.mxu0
        %1053 = vmatprep.mubr.bf16.mxu0 0
        %1054 = vmatmul.mubr.bf16.gmra.mxu0 %v1000
        %v1055 = vpop.f32.mrf.mxu0
        %v1056 = vadd.f32 0.0, %v1055
        %v1057 = vpop.f32.mrf.mxu0
        %v1058 = vpop.f32.mrf.mxu0
        %v1059 = vadd.f32 0.0, %v1058
        %v1060 = vpop.f32.mrf.mxu0
        %1061 = vmatprep.mubr.bf16.mxu0 0
        %1062 = vmatmul.mubr.bf16.gmra.mxu0 %v1003
        %v1063 = vpop.f32.mrf.mxu0
        %v1064 = vadd.f32 0.0, %v1063
        %v1065 = vpop.f32.mrf.mxu0
        %v1066 = vpop.f32.mrf.mxu0
        %v1067 = vadd.f32 0.0, %v1066
        %v1068 = vpop.f32.mrf.mxu0
        %1069 = vdwg.mxu0
        %v1070 = vadd.f32 %v594, %v1040
        %v1071 = vadd.f32 %v597, %v1043
        %v1072 = vadd.f32 %v602, %v1048
        %v1073 = vadd.f32 %v605, %v1051
        %v1074 = vadd.f32 %v610, %v1056
        %v1075 = vadd.f32 %v613, %v1059
        %v1076 = vadd.f32 %v618, %v1064
        %v1077 = vadd.f32 %v621, %v1067
        %s1078 = scalar_lea.vmem %s7, 2
        %v1079 = vld [vmem:[%s1078] sm:$0x1]
        %v1081 = vlaneseq
        %v1082 = vshrl.u32 %v1081, 7
        %v1083 = vsub.s32 0, %v1082
        %v1084 = vrot.slane %v1079, %v1083
        %v1086 = vadd.f32 %v1070, %v1084
        %v1087 = vadd.f32 %v1071, %v1084
        %v1088 = vadd.f32 %v1072, %v1084
        %v1089 = vadd.f32 %v1073, %v1084
        %v1090 = vadd.f32 %v1074, %v1084
        %v1091 = vadd.f32 %v1075, %v1084
        %v1092 = vadd.f32 %v1076, %v1084
        %v1093 = vadd.f32 %v1077, %v1084
        %v1094 = vmul.f32 %v1086, 0.2
        %v1095 = vmul.f32 %v1087, 0.2
        %v1096 = vmul.f32 %v1088, 0.2
        %v1097 = vmul.f32 %v1089, 0.2
        %v1098 = vmul.f32 %v1090, 0.2
        %v1099 = vmul.f32 %v1091, 0.2
        %v1100 = vmul.f32 %v1092, 0.2
        %v1101 = vmul.f32 %v1093, 0.2
        %v1102 = vmax.f32 %v1086, %v1094
        %v1103 = vmax.f32 %v1087, %v1095
        %v1104 = vmax.f32 %v1088, %v1096
        %v1105 = vmax.f32 %v1089, %v1097
        %v1106 = vmax.f32 %v1090, %v1098
        %v1107 = vmax.f32 %v1091, %v1099
        %v1108 = vmax.f32 %v1092, %v1100
        %v1109 = vmax.f32 %v1093, %v1101
        %v1110 = vmax.f32 %v776, %v939
        %v1111 = vmax.f32 %v777, %v940
        %v1112 = vmax.f32 %v778, %v941
        %v1113 = vmax.f32 %v779, %v942
        %v1114 = vmax.f32 %v780, %v943
        %v1115 = vmax.f32 %v781, %v944
        %v1116 = vmax.f32 %v782, %v945
        %v1117 = vmax.f32 %v783, %v946
        %v1118 = vmax.f32 %v1110, %v1102
        %v1119 = vmax.f32 %v1111, %v1103
        %v1120 = vmax.f32 %v1112, %v1104
        %v1121 = vmax.f32 %v1113, %v1105
        %v1122 = vmax.f32 %v1114, %v1106
        %v1123 = vmax.f32 %v1115, %v1107
        %v1124 = vmax.f32 %v1116, %v1108
        %v1125 = vmax.f32 %v1117, %v1109
        %v1126 = vsub.f32 %v776, %v1118
        %v1127 = vsub.f32 %v777, %v1119
        %v1128 = vsub.f32 %v778, %v1120
        %v1129 = vsub.f32 %v779, %v1121
        %v1130 = vsub.f32 %v780, %v1122
        %v1131 = vsub.f32 %v781, %v1123
        %v1132 = vsub.f32 %v782, %v1124
        %v1133 = vsub.f32 %v783, %v1125
        %v1134 = vmul.f32 %v1126, 1.442695
        %v1135 = vpow.pop %v1134
        %v1136 = vmul.f32 %v1127, 1.442695
        %v1137 = vpow.pop %v1136
        %v1138 = vmul.f32 %v1128, 1.442695
        %v1139 = vpow.pop %v1138
        %v1140 = vmul.f32 %v1129, 1.442695
        %v1141 = vpow.pop %v1140
        %v1142 = vmul.f32 %v1130, 1.442695
        %v1143 = vpow.pop %v1142
        %v1144 = vmul.f32 %v1131, 1.442695
        %v1145 = vpow.pop %v1144
        %v1146 = vmul.f32 %v1132, 1.442695
        %v1147 = vpow.pop %v1146
        %v1148 = vmul.f32 %v1133, 1.442695
        %v1149 = vpow.pop %v1148
        %v1150 = vsub.f32 %v939, %v1118
        %v1151 = vsub.f32 %v940, %v1119
        %v1152 = vsub.f32 %v941, %v1120
        %v1153 = vsub.f32 %v942, %v1121
        %v1154 = vsub.f32 %v943, %v1122
        %v1155 = vsub.f32 %v944, %v1123
        %v1156 = vsub.f32 %v945, %v1124
        %v1157 = vsub.f32 %v946, %v1125
        %v1158 = vmul.f32 %v1150, 1.442695
        %v1159 = vpow.pop %v1158
        %v1160 = vmul.f32 %v1151, 1.442695
        %v1161 = vpow.pop %v1160
        %v1162 = vmul.f32 %v1152, 1.442695
        %v1163 = vpow.pop %v1162
        %v1164 = vmul.f32 %v1153, 1.442695
        %v1165 = vpow.pop %v1164
        %v1166 = vmul.f32 %v1154, 1.442695
        %v1167 = vpow.pop %v1166
        %v1168 = vmul.f32 %v1155, 1.442695
        %v1169 = vpow.pop %v1168
        %v1170 = vmul.f32 %v1156, 1.442695
        %v1171 = vpow.pop %v1170
        %v1172 = vmul.f32 %v1157, 1.442695
        %v1173 = vpow.pop %v1172
        %v1174 = vsub.f32 %v1102, %v1118
        %v1175 = vsub.f32 %v1103, %v1119
        %v1176 = vsub.f32 %v1104, %v1120
        %v1177 = vsub.f32 %v1105, %v1121
        %v1178 = vsub.f32 %v1106, %v1122
        %v1179 = vsub.f32 %v1107, %v1123
        %v1180 = vsub.f32 %v1108, %v1124
        %v1181 = vsub.f32 %v1109, %v1125
        %v1182 = vmul.f32 %v1174, 1.442695
        %v1183 = vpow.pop %v1182
        %v1184 = vmul.f32 %v1175, 1.442695
        %v1185 = vpow.pop %v1184
        %v1186 = vmul.f32 %v1176, 1.442695
        %v1187 = vpow.pop %v1186
        %v1188 = vmul.f32 %v1177, 1.442695
        %v1189 = vpow.pop %v1188
        %v1190 = vmul.f32 %v1178, 1.442695
        %v1191 = vpow.pop %v1190
        %v1192 = vmul.f32 %v1179, 1.442695
        %v1193 = vpow.pop %v1192
        %v1194 = vmul.f32 %v1180, 1.442695
        %v1195 = vpow.pop %v1194
        %v1196 = vmul.f32 %v1181, 1.442695
        %v1197 = vpow.pop %v1196
        %v1198 = vadd.f32 %v1135, %v1159
        %v1199 = vadd.f32 %v1137, %v1161
        %v1200 = vadd.f32 %v1139, %v1163
        %v1201 = vadd.f32 %v1141, %v1165
        %v1202 = vadd.f32 %v1143, %v1167
        %v1203 = vadd.f32 %v1145, %v1169
        %v1204 = vadd.f32 %v1147, %v1171
        %v1205 = vadd.f32 %v1149, %v1173
        %v1206 = vadd.f32 %v1198, %v1183
        %v1207 = vadd.f32 %v1199, %v1185
        %v1208 = vadd.f32 %v1200, %v1187
        %v1209 = vadd.f32 %v1201, %v1189
        %v1210 = vadd.f32 %v1202, %v1191
        %v1211 = vadd.f32 %v1203, %v1193
        %v1212 = vadd.f32 %v1204, %v1195
        %v1213 = vadd.f32 %v1205, %v1197
        %v1214 = vrcp.pop %v1206
        %v1215 = vrcp.pop %v1207
        %v1216 = vrcp.pop %v1208
        %v1217 = vrcp.pop %v1209
        %v1218 = vrcp.pop %v1210
        %v1219 = vrcp.pop %v1211
        %v1220 = vrcp.pop %v1212
        %v1221 = vrcp.pop %v1213
        %v1222 = vld [vmem:[%s2] sm:$0xf]
        %v1223 = vld [vmem:[%s2 + $0x4] sm:$0xf]
        %v1224 = vld [vmem:[%s2 + $0x8] sm:$0xf]
        %v1225 = vld [vmem:[%s2 + $0xc] sm:$0xf]
        %v1226 = vld [vmem:[%s3] sm:$0x1]
        %v1228 = vlaneseq
        %v1229 = vshrl.u32 %v1228, 7
        %v1230 = vsub.s32 0, %v1229
        %v1231 = vrot.slane %v1226, %v1230
        %v1237 = vunpack.c.l.b16 %v1222
        %v1238 = vunpack.c.l.b16 %v1223
        %v1239 = vunpack.c.l.b16 %v1224
        %v1240 = vunpack.c.l.b16 %v1225
        %v1241 = vpack.c.b16 %v1238, %v1237
        %v1242 = vpack.c.b16 %v1240, %v1239
        %1245 = vmatprep.subr.bf16.mxu0 0
        %1246 = vmatpush1.bf16.msra.mxu0 0
        %1247 = vmatprep.subr.bf16.mxu0 0
        %1248 = vmatpush1.bf16.msra.mxu0 0
        %1249 = vmatprep.subr.bf16.mxu0 0
        %1250 = vmatpush1.bf16.msra.mxu0 0
        %1251 = vmatprep.subr.bf16.mxu0 0
        %1252 = vmatpush1.bf16.msra.mxu0 0
        %1253 = vmatprep.subr.bf16.mxu0 0
        %1254 = vmatpush1.bf16.msra.mxu0 0
        %1255 = vmatprep.subr.bf16.mxu0 0
        %1256 = vmatpush1.bf16.msra.mxu0 0
        %1257 = vmatprep.subr.bf16.mxu0 0
        %1258 = vmatpush1.bf16.msra.mxu0 %v1242
        %1259 = vmatprep.subr.bf16.mxu0 0
        %1260 = vmatpush1.bf16.msra.mxu0 %v1241
        %1261 = vmatprep.subr.bf16.mxu0 0
        %1262 = vmatpush2.bf16.msra.mxu0 0
        %1263 = vmatprep.subr.bf16.mxu0 0
        %1264 = vmatpush2.bf16.msra.mxu0 0
        %1265 = vmatprep.subr.bf16.mxu0 0
        %1266 = vmatpush2.bf16.msra.mxu0 0
        %1267 = vmatprep.subr.bf16.mxu0 0
        %1268 = vmatpush2.bf16.msra.mxu0 0
        %1269 = vmatprep.subr.bf16.mxu0 0
        %1270 = vmatpush2.bf16.msra.mxu0 0
        %1271 = vmatprep.subr.bf16.mxu0 0
        %1272 = vmatpush2.bf16.msra.mxu0 0
        %1273 = vmatprep.subr.bf16.mxu0 0
        %1274 = vmatpush2.bf16.msra.mxu0 0
        %1275 = vmatprep.subr.bf16.mxu0 0
        %1276 = vmatpush2.bf16.msra.mxu0 0
        %1277 = vmatprep.mubr.bf16.mxu0 0
        %1278 = vmatmul.mubr.bf16.gmra.mxu0 %v669
        %v1279 = vpop.f32.mrf.mxu0
        %v1280 = vadd.f32 %v1231, %v1279
        %v1281 = vpop.f32.mrf.mxu0
        %v1282 = vpop.f32.mrf.mxu0
        %v1283 = vadd.f32 %v1231, %v1282
        %v1284 = vpop.f32.mrf.mxu0
        %1285 = vmatprep.mubr.bf16.mxu0 0
        %1286 = vmatmul.mubr.bf16.gmra.mxu0 %v672
        %v1287 = vpop.f32.mrf.mxu0
        %v1288 = vadd.f32 %v1231, %v1287
        %v1289 = vpop.f32.mrf.mxu0
        %v1290 = vpop.f32.mrf.mxu0
        %v1291 = vadd.f32 %v1231, %v1290
        %v1292 = vpop.f32.mrf.mxu0
        %1293 = vmatprep.mubr.bf16.mxu0 0
        %1294 = vmatmul.mubr.bf16.gmra.mxu0 %v675
        %v1295 = vpop.f32.mrf.mxu0
        %v1296 = vadd.f32 %v1231, %v1295
        %v1297 = vpop.f32.mrf.mxu0
        %v1298 = vpop.f32.mrf.mxu0
        %v1299 = vadd.f32 %v1231, %v1298
        %v1300 = vpop.f32.mrf.mxu0
        %1301 = vmatprep.mubr.bf16.mxu0 0
        %1302 = vmatmul.mubr.bf16.gmra.mxu0 %v678
        %v1303 = vpop.f32.mrf.mxu0
        %v1304 = vadd.f32 %v1231, %v1303
        %v1305 = vpop.f32.mrf.mxu0
        %v1306 = vpop.f32.mrf.mxu0
        %v1307 = vadd.f32 %v1231, %v1306
        %v1308 = vpop.f32.mrf.mxu0
        %1309 = vdwg.mxu0
        %v1310 = vmul.f32 %v1135, %v1214
        %v1311 = vmul.f32 %v1137, %v1215
        %v1312 = vmul.f32 %v1139, %v1216
        %v1313 = vmul.f32 %v1141, %v1217
        %v1314 = vmul.f32 %v1143, %v1218
        %v1315 = vmul.f32 %v1145, %v1219
        %v1316 = vmul.f32 %v1147, %v1220
        %v1317 = vmul.f32 %v1149, %v1221
        %vm1318 = vcmask 31744
        %v1320 = vsel %vm1318, %v1310, 0
        %v1323 = vsel %vm1318, %v1311, 0
        %v1326 = vsel %vm1318, %v1312, 0
        %v1329 = vsel %vm1318, %v1313, 0
        %v1332 = vsel %vm1318, %v1314, 0
        %v1335 = vsel %vm1318, %v1315, 0
        %v1338 = vsel %vm1318, %v1316, 0
        %v1341 = vsel %vm1318, %v1317, 0
        %vm1343 = vcmask 1043456
        %v1345 = vsel %vm1343, %v494, 0
        %1347 = vmatprep.subr.mxu0 0.0
        %1348 = vmatpush1.msra.mxu0 0.0
        %1349 = vmatprep.subr.mxu0 0.0
        %1350 = vmatpush1.msra.mxu0 0.0
        %1351 = vmatprep.subr.mxu0 0.0
        %1352 = vmatpush1.msra.mxu0 0.0
        %1353 = vmatprep.subr.mxu0 0.0
        %1354 = vmatpush1.msra.mxu0 0.0
        %1355 = vmatprep.subr.mxu0 0.0
        %1356 = vmatpush1.msra.mxu0 0.0
        %1357 = vmatprep.subr.mxu0 0.0
        %1358 = vmatpush1.msra.mxu0 0.0
        %1359 = vmatprep.subr.mxu0 0.0
        %1360 = vmatpush1.msra.mxu0 0.0
        %1361 = vmatprep.subr.mxu0 0.0
        %1362 = vmatpush1.msra.mxu0 0.0
        %1363 = vmatprep.subr.mxu0 0.0
        %1364 = vmatpush1.msra.mxu0 0.0
        %1365 = vmatprep.subr.mxu0 0.0
        %1366 = vmatpush1.msra.mxu0 0.0
        %1367 = vmatprep.subr.mxu0 0.0
        %1368 = vmatpush1.msra.mxu0 0.0
        %1369 = vmatprep.subr.mxu0 0.0
        %1370 = vmatpush1.msra.mxu0 0.0
        %1371 = vmatprep.subr.mxu0 0.0
        %1372 = vmatpush1.msra.mxu0 0.0
        %1373 = vmatprep.subr.mxu0 0.0
        %1374 = vmatpush1.msra.mxu0 0.0
        %1375 = vmatprep.subr.mxu0 0.0
        %1376 = vmatpush1.msra.mxu0 0.0
        %1377 = vmatprep.subr.mxu0 0.0
        %1378 = vmatpush1.msra.mxu0 %v1345
        %1379 = vmatprep.subr.mxu0 0.0
        %1380 = vmatpush2.msra.mxu0 0.0
        %1381 = vmatprep.subr.mxu0 0.0
        %1382 = vmatpush2.msra.mxu0 0.0
        %1383 = vmatprep.subr.mxu0 0.0
        %1384 = vmatpush2.msra.mxu0 0.0
        %1385 = vmatprep.subr.mxu0 0.0
        %1386 = vmatpush2.msra.mxu0 0.0
        %1387 = vmatprep.subr.mxu0 0.0
        %1388 = vmatpush2.msra.mxu0 0.0
        %1389 = vmatprep.subr.mxu0 0.0
        %1390 = vmatpush2.msra.mxu0 0.0
        %1391 = vmatprep.subr.mxu0 0.0
        %1392 = vmatpush2.msra.mxu0 0.0
        %1393 = vmatprep.subr.mxu0 0.0
        %1394 = vmatpush2.msra.mxu0 0.0
        %1395 = vmatprep.subr.mxu0 0.0
        %1396 = vmatpush2.msra.mxu0 0.0
        %1397 = vmatprep.subr.mxu0 0.0
        %1398 = vmatpush2.msra.mxu0 0.0
        %1399 = vmatprep.subr.mxu0 0.0
        %1400 = vmatpush2.msra.mxu0 0.0
        %1401 = vmatprep.subr.mxu0 0.0
        %1402 = vmatpush2.msra.mxu0 0.0
        %1403 = vmatprep.subr.mxu0 0.0
        %1404 = vmatpush2.msra.mxu0 0.0
        %1405 = vmatprep.subr.mxu0 0.0
        %1406 = vmatpush2.msra.mxu0 0.0
        %1407 = vmatprep.subr.mxu0 0.0
        %1408 = vmatpush2.msra.mxu0 0.0
        %1409 = vmatprep.subr.mxu0 0.0
        %1410 = vmatpush2.msra.mxu0 0.0
        %1411 = vmatprep.mubr.f32.mxu0 0.0
        %1412 = vmatmul.mubr.f32.gmra.mxu0 %v1320
        %v1413 = vpop.f32.mrf.mxu0
        %v1414 = vadd.f32 0.0, %v1413
        %v1415 = vpop.f32.mrf.mxu0
        %1416 = vmatprep.mubr.f32.mxu0 0.0
        %1417 = vmatmul.mubr.f32.gmra.mxu0 %v1323
        %v1418 = vpop.f32.mrf.mxu0
        %v1419 = vadd.f32 0.0, %v1418
        %v1420 = vpop.f32.mrf.mxu0
        %1421 = vmatprep.mubr.f32.mxu0 0.0
        %1422 = vmatmul.mubr.f32.gmra.mxu0 %v1326
        %v1423 = vpop.f32.mrf.mxu0
        %v1424 = vadd.f32 0.0, %v1423
        %v1425 = vpop.f32.mrf.mxu0
        %1426 = vmatprep.mubr.f32.mxu0 0.0
        %1427 = vmatmul.mubr.f32.gmra.mxu0 %v1329
        %v1428 = vpop.f32.mrf.mxu0
        %v1429 = vadd.f32 0.0, %v1428
        %v1430 = vpop.f32.mrf.mxu0
        %1431 = vmatprep.mubr.f32.mxu0 0.0
        %1432 = vmatmul.mubr.f32.gmra.mxu0 %v1332
        %v1433 = vpop.f32.mrf.mxu0
        %v1434 = vadd.f32 0.0, %v1433
        %v1435 = vpop.f32.mrf.mxu0
        %1436 = vmatprep.mubr.f32.mxu0 0.0
        %1437 = vmatmul.mubr.f32.gmra.mxu0 %v1335
        %v1438 = vpop.f32.mrf.mxu0
        %v1439 = vadd.f32 0.0, %v1438
        %v1440 = vpop.f32.mrf.mxu0
        %1441 = vmatprep.mubr.f32.mxu0 0.0
        %1442 = vmatmul.mubr.f32.gmra.mxu0 %v1338
        %v1443 = vpop.f32.mrf.mxu0
        %v1444 = vadd.f32 0.0, %v1443
        %v1445 = vpop.f32.mrf.mxu0
        %1446 = vmatprep.mubr.f32.mxu0 0.0
        %1447 = vmatmul.mubr.f32.gmra.mxu0 %v1341
        %v1448 = vpop.f32.mrf.mxu0
        %v1449 = vadd.f32 0.0, %v1448
        %v1450 = vpop.f32.mrf.mxu0
        %1451 = vdwg.mxu0
        %v1452 = vmul.f32 %v1414, %v1280
        %v1453 = vmul.f32 %v1419, %v1283
        %v1454 = vmul.f32 %v1424, %v1288
        %v1455 = vmul.f32 %v1429, %v1291
        %v1456 = vmul.f32 %v1434, %v1296
        %v1457 = vmul.f32 %v1439, %v1299
        %v1458 = vmul.f32 %v1444, %v1304
        %v1459 = vmul.f32 %v1449, %v1307
        %v1460 = vadd.f32 %v1452, 0.0
        %v1461 = vadd.f32 %v1453, 0.0
        %v1462 = vadd.f32 %v1454, 0.0
        %v1463 = vadd.f32 %v1455, 0.0
        %v1464 = vadd.f32 %v1456, 0.0
        %v1465 = vadd.f32 %v1457, 0.0
        %v1466 = vadd.f32 %v1458, 0.0
        %v1467 = vadd.f32 %v1459, 0.0
        %s1468 = scalar_lea.vmem %s2, 16
        %v1469 = vld [vmem:[%s1468] sm:$0xf]
        %v1470 = vld [vmem:[%s1468 + $0x4] sm:$0xf]
        %v1471 = vld [vmem:[%s1468 + $0x8] sm:$0xf]
        %v1472 = vld [vmem:[%s1468 + $0xc] sm:$0xf]
        %s1473 = scalar_lea.vmem %s3, 1
        %v1474 = vld [vmem:[%s1473] sm:$0x1]
        %v1476 = vlaneseq
        %v1477 = vshrl.u32 %v1476, 7
        %v1478 = vsub.s32 0, %v1477
        %v1479 = vrot.slane %v1474, %v1478
        %v1485 = vunpack.c.l.b16 %v1469
        %v1486 = vunpack.c.l.b16 %v1470
        %v1487 = vunpack.c.l.b16 %v1471
        %v1488 = vunpack.c.l.b16 %v1472
        %v1489 = vpack.c.b16 %v1486, %v1485
        %v1490 = vpack.c.b16 %v1488, %v1487
        %1493 = vmatprep.subr.bf16.mxu0 0
        %1494 = vmatpush1.bf16.msra.mxu0 0
        %1495 = vmatprep.subr.bf16.mxu0 0
        %1496 = vmatpush1.bf16.msra.mxu0 0
        %1497 = vmatprep.subr.bf16.mxu0 0
        %1498 = vmatpush1.bf16.msra.mxu0 0
        %1499 = vmatprep.subr.bf16.mxu0 0
        %1500 = vmatpush1.bf16.msra.mxu0 0
        %1501 = vmatprep.subr.bf16.mxu0 0
        %1502 = vmatpush1.bf16.msra.mxu0 0
        %1503 = vmatprep.subr.bf16.mxu0 0
        %1504 = vmatpush1.bf16.msra.mxu0 0
        %1505 = vmatprep.subr.bf16.mxu0 0
        %1506 = vmatpush1.bf16.msra.mxu0 %v1490
        %1507 = vmatprep.subr.bf16.mxu0 0
        %1508 = vmatpush1.bf16.msra.mxu0 %v1489
        %1509 = vmatprep.subr.bf16.mxu0 0
        %1510 = vmatpush2.bf16.msra.mxu0 0
        %1511 = vmatprep.subr.bf16.mxu0 0
        %1512 = vmatpush2.bf16.msra.mxu0 0
        %1513 = vmatprep.subr.bf16.mxu0 0
        %1514 = vmatpush2.bf16.msra.mxu0 0
        %1515 = vmatprep.subr.bf16.mxu0 0
        %1516 = vmatpush2.bf16.msra.mxu0 0
        %1517 = vmatprep.subr.bf16.mxu0 0
        %1518 = vmatpush2.bf16.msra.mxu0 0
        %1519 = vmatprep.subr.bf16.mxu0 0
        %1520 = vmatpush2.bf16.msra.mxu0 0
        %1521 = vmatprep.subr.bf16.mxu0 0
        %1522 = vmatpush2.bf16.msra.mxu0 0
        %1523 = vmatprep.subr.bf16.mxu0 0
        %1524 = vmatpush2.bf16.msra.mxu0 0
        %1525 = vmatprep.mubr.bf16.mxu0 0
        %1526 = vmatmul.mubr.bf16.gmra.mxu0 %v831
        %v1527 = vpop.f32.mrf.mxu0
        %v1528 = vadd.f32 %v1479, %v1527
        %v1529 = vpop.f32.mrf.mxu0
        %v1530 = vpop.f32.mrf.mxu0
        %v1531 = vadd.f32 %v1479, %v1530
        %v1532 = vpop.f32.mrf.mxu0
        %1533 = vmatprep.mubr.bf16.mxu0 0
        %1534 = vmatmul.mubr.bf16.gmra.mxu0 %v834
        %v1535 = vpop.f32.mrf.mxu0
        %v1536 = vadd.f32 %v1479, %v1535
        %v1537 = vpop.f32.mrf.mxu0
        %v1538 = vpop.f32.mrf.mxu0
        %v1539 = vadd.f32 %v1479, %v1538
        %v1540 = vpop.f32.mrf.mxu0
        %1541 = vmatprep.mubr.bf16.mxu0 0
        %1542 = vmatmul.mubr.bf16.gmra.mxu0 %v837
        %v1543 = vpop.f32.mrf.mxu0
        %v1544 = vadd.f32 %v1479, %v1543
        %v1545 = vpop.f32.mrf.mxu0
        %v1546 = vpop.f32.mrf.mxu0
        %v1547 = vadd.f32 %v1479, %v1546
        %v1548 = vpop.f32.mrf.mxu0
        %1549 = vmatprep.mubr.bf16.mxu0 0
        %1550 = vmatmul.mubr.bf16.gmra.mxu0 %v840
        %v1551 = vpop.f32.mrf.mxu0
        %v1552 = vadd.f32 %v1479, %v1551
        %v1553 = vpop.f32.mrf.mxu0
        %v1554 = vpop.f32.mrf.mxu0
        %v1555 = vadd.f32 %v1479, %v1554
        %v1556 = vpop.f32.mrf.mxu0
        %1557 = vdwg.mxu0
        %v1558 = vmul.f32 %v1159, %v1214
        %v1559 = vmul.f32 %v1161, %v1215
        %v1560 = vmul.f32 %v1163, %v1216
        %v1561 = vmul.f32 %v1165, %v1217
        %v1562 = vmul.f32 %v1167, %v1218
        %v1563 = vmul.f32 %v1169, %v1219
        %v1564 = vmul.f32 %v1171, %v1220
        %v1565 = vmul.f32 %v1173, %v1221
        %v1567 = vsel %vm1318, %v1558, 0
        %v1570 = vsel %vm1318, %v1559, 0
        %v1573 = vsel %vm1318, %v1560, 0
        %v1576 = vsel %vm1318, %v1561, 0
        %v1579 = vsel %vm1318, %v1562, 0
        %v1582 = vsel %vm1318, %v1563, 0
        %v1585 = vsel %vm1318, %v1564, 0
        %v1588 = vsel %vm1318, %v1565, 0
        %1590 = vmatprep.subr.mxu0 0.0
        %1591 = vmatpush1.msra.mxu0 0.0
        %1592 = vmatprep.subr.mxu0 0.0
        %1593 = vmatpush1.msra.mxu0 0.0
        %1594 = vmatprep.subr.mxu0 0.0
        %1595 = vmatpush1.msra.mxu0 0.0
        %1596 = vmatprep.subr.mxu0 0.0
        %1597 = vmatpush1.msra.mxu0 0.0
        %1598 = vmatprep.subr.mxu0 0.0
        %1599 = vmatpush1.msra.mxu0 0.0
        %1600 = vmatprep.subr.mxu0 0.0
        %1601 = vmatpush1.msra.mxu0 0.0
        %1602 = vmatprep.subr.mxu0 0.0
        %1603 = vmatpush1.msra.mxu0 0.0
        %1604 = vmatprep.subr.mxu0 0.0
        %1605 = vmatpush1.msra.mxu0 0.0
        %1606 = vmatprep.subr.mxu0 0.0
        %1607 = vmatpush1.msra.mxu0 0.0
        %1608 = vmatprep.subr.mxu0 0.0
        %1609 = vmatpush1.msra.mxu0 0.0
        %1610 = vmatprep.subr.mxu0 0.0
        %1611 = vmatpush1.msra.mxu0 0.0
        %1612 = vmatprep.subr.mxu0 0.0
        %1613 = vmatpush1.msra.mxu0 0.0
        %1614 = vmatprep.subr.mxu0 0.0
        %1615 = vmatpush1.msra.mxu0 0.0
        %1616 = vmatprep.subr.mxu0 0.0
        %1617 = vmatpush1.msra.mxu0 0.0
        %1618 = vmatprep.subr.mxu0 0.0
        %1619 = vmatpush1.msra.mxu0 0.0
        %1620 = vmatprep.subr.mxu0 0.0
        %1621 = vmatpush1.msra.mxu0 %v1345
        %1622 = vmatprep.subr.mxu0 0.0
        %1623 = vmatpush2.msra.mxu0 0.0
        %1624 = vmatprep.subr.mxu0 0.0
        %1625 = vmatpush2.msra.mxu0 0.0
        %1626 = vmatprep.subr.mxu0 0.0
        %1627 = vmatpush2.msra.mxu0 0.0
        %1628 = vmatprep.subr.mxu0 0.0
        %1629 = vmatpush2.msra.mxu0 0.0
        %1630 = vmatprep.subr.mxu0 0.0
        %1631 = vmatpush2.msra.mxu0 0.0
        %1632 = vmatprep.subr.mxu0 0.0
        %1633 = vmatpush2.msra.mxu0 0.0
        %1634 = vmatprep.subr.mxu0 0.0
        %1635 = vmatpush2.msra.mxu0 0.0
        %1636 = vmatprep.subr.mxu0 0.0
        %1637 = vmatpush2.msra.mxu0 0.0
        %1638 = vmatprep.subr.mxu0 0.0
        %1639 = vmatpush2.msra.mxu0 0.0
        %1640 = vmatprep.subr.mxu0 0.0
        %1641 = vmatpush2.msra.mxu0 0.0
        %1642 = vmatprep.subr.mxu0 0.0
        %1643 = vmatpush2.msra.mxu0 0.0
        %1644 = vmatprep.subr.mxu0 0.0
        %1645 = vmatpush2.msra.mxu0 0.0
        %1646 = vmatprep.subr.mxu0 0.0
        %1647 = vmatpush2.msra.mxu0 0.0
        %1648 = vmatprep.subr.mxu0 0.0
        %1649 = vmatpush2.msra.mxu0 0.0
        %1650 = vmatprep.subr.mxu0 0.0
        %1651 = vmatpush2.msra.mxu0 0.0
        %1652 = vmatprep.subr.mxu0 0.0
        %1653 = vmatpush2.msra.mxu0 0.0
        %1654 = vmatprep.mubr.f32.mxu0 0.0
        %1655 = vmatmul.mubr.f32.gmra.mxu0 %v1567
        %v1656 = vpop.f32.mrf.mxu0
        %v1657 = vadd.f32 0.0, %v1656
        %v1658 = vpop.f32.mrf.mxu0
        %1659 = vmatprep.mubr.f32.mxu0 0.0
        %1660 = vmatmul.mubr.f32.gmra.mxu0 %v1570
        %v1661 = vpop.f32.mrf.mxu0
        %v1662 = vadd.f32 0.0, %v1661
        %v1663 = vpop.f32.mrf.mxu0
        %1664 = vmatprep.mubr.f32.mxu0 0.0
        %1665 = vmatmul.mubr.f32.gmra.mxu0 %v1573
        %v1666 = vpop.f32.mrf.mxu0
        %v1667 = vadd.f32 0.0, %v1666
        %v1668 = vpop.f32.mrf.mxu0
        %1669 = vmatprep.mubr.f32.mxu0 0.0
        %1670 = vmatmul.mubr.f32.gmra.mxu0 %v1576
        %v1671 = vpop.f32.mrf.mxu0
        %v1672 = vadd.f32 0.0, %v1671
        %v1673 = vpop.f32.mrf.mxu0
        %1674 = vmatprep.mubr.f32.mxu0 0.0
        %1675 = vmatmul.mubr.f32.gmra.mxu0 %v1579
        %v1676 = vpop.f32.mrf.mxu0
        %v1677 = vadd.f32 0.0, %v1676
        %v1678 = vpop.f32.mrf.mxu0
        %1679 = vmatprep.mubr.f32.mxu0 0.0
        %1680 = vmatmul.mubr.f32.gmra.mxu0 %v1582
        %v1681 = vpop.f32.mrf.mxu0
        %v1682 = vadd.f32 0.0, %v1681
        %v1683 = vpop.f32.mrf.mxu0
        %1684 = vmatprep.mubr.f32.mxu0 0.0
        %1685 = vmatmul.mubr.f32.gmra.mxu0 %v1585
        %v1686 = vpop.f32.mrf.mxu0
        %v1687 = vadd.f32 0.0, %v1686
        %v1688 = vpop.f32.mrf.mxu0
        %1689 = vmatprep.mubr.f32.mxu0 0.0
        %1690 = vmatmul.mubr.f32.gmra.mxu0 %v1588
        %v1691 = vpop.f32.mrf.mxu0
        %v1692 = vadd.f32 0.0, %v1691
        %v1693 = vpop.f32.mrf.mxu0
        %1694 = vdwg.mxu0
        %v1695 = vmul.f32 %v1657, %v1528
        %v1696 = vmul.f32 %v1662, %v1531
        %v1697 = vmul.f32 %v1667, %v1536
        %v1698 = vmul.f32 %v1672, %v1539
        %v1699 = vmul.f32 %v1677, %v1544
        %v1700 = vmul.f32 %v1682, %v1547
        %v1701 = vmul.f32 %v1687, %v1552
        %v1702 = vmul.f32 %v1692, %v1555
        %v1703 = vadd.f32 %v1460, %v1695
        %v1704 = vadd.f32 %v1461, %v1696
        %v1705 = vadd.f32 %v1462, %v1697
        %v1706 = vadd.f32 %v1463, %v1698
        %v1707 = vadd.f32 %v1464, %v1699
        %v1708 = vadd.f32 %v1465, %v1700
        %v1709 = vadd.f32 %v1466, %v1701
        %v1710 = vadd.f32 %v1467, %v1702
        %s1711 = scalar_lea.vmem %s2, 32
        %v1712 = vld [vmem:[%s1711] sm:$0xf]
        %v1713 = vld [vmem:[%s1711 + $0x4] sm:$0xf]
        %v1714 = vld [vmem:[%s1711 + $0x8] sm:$0xf]
        %v1715 = vld [vmem:[%s1711 + $0xc] sm:$0xf]
        %s1716 = scalar_lea.vmem %s3, 2
        %v1717 = vld [vmem:[%s1716] sm:$0x1]
        %v1719 = vlaneseq
        %v1720 = vshrl.u32 %v1719, 7
        %v1721 = vsub.s32 0, %v1720
        %v1722 = vrot.slane %v1717, %v1721
        %v1728 = vunpack.c.l.b16 %v1712
        %v1729 = vunpack.c.l.b16 %v1713
        %v1730 = vunpack.c.l.b16 %v1714
        %v1731 = vunpack.c.l.b16 %v1715
        %v1732 = vpack.c.b16 %v1729, %v1728
        %v1733 = vpack.c.b16 %v1731, %v1730
        %1736 = vmatprep.subr.bf16.mxu0 0
        %1737 = vmatpush1.bf16.msra.mxu0 0
        %1738 = vmatprep.subr.bf16.mxu0 0
        %1739 = vmatpush1.bf16.msra.mxu0 0
        %1740 = vmatprep.subr.bf16.mxu0 0
        %1741 = vmatpush1.bf16.msra.mxu0 0
        %1742 = vmatprep.subr.bf16.mxu0 0
        %1743 = vmatpush1.bf16.msra.mxu0 0
        %1744 = vmatprep.subr.bf16.mxu0 0
        %1745 = vmatpush1.bf16.msra.mxu0 0
        %1746 = vmatprep.subr.bf16.mxu0 0
        %1747 = vmatpush1.bf16.msra.mxu0 0
        %1748 = vmatprep.subr.bf16.mxu0 0
        %1749 = vmatpush1.bf16.msra.mxu0 %v1733
        %1750 = vmatprep.subr.bf16.mxu0 0
        %1751 = vmatpush1.bf16.msra.mxu0 %v1732
        %1752 = vmatprep.subr.bf16.mxu0 0
        %1753 = vmatpush2.bf16.msra.mxu0 0
        %1754 = vmatprep.subr.bf16.mxu0 0
        %1755 = vmatpush2.bf16.msra.mxu0 0
        %1756 = vmatprep.subr.bf16.mxu0 0
        %1757 = vmatpush2.bf16.msra.mxu0 0
        %1758 = vmatprep.subr.bf16.mxu0 0
        %1759 = vmatpush2.bf16.msra.mxu0 0
        %1760 = vmatprep.subr.bf16.mxu0 0
        %1761 = vmatpush2.bf16.msra.mxu0 0
        %1762 = vmatprep.subr.bf16.mxu0 0
        %1763 = vmatpush2.bf16.msra.mxu0 0
        %1764 = vmatprep.subr.bf16.mxu0 0
        %1765 = vmatpush2.bf16.msra.mxu0 0
        %1766 = vmatprep.subr.bf16.mxu0 0
        %1767 = vmatpush2.bf16.msra.mxu0 0
        %1768 = vmatprep.mubr.bf16.mxu0 0
        %1769 = vmatmul.mubr.bf16.gmra.mxu0 %v994
        %v1770 = vpop.f32.mrf.mxu0
        %v1771 = vadd.f32 %v1722, %v1770
        %v1772 = vpop.f32.mrf.mxu0
        %v1773 = vpop.f32.mrf.mxu0
        %v1774 = vadd.f32 %v1722, %v1773
        %v1775 = vpop.f32.mrf.mxu0
        %1776 = vmatprep.mubr.bf16.mxu0 0
        %1777 = vmatmul.mubr.bf16.gmra.mxu0 %v997
        %v1778 = vpop.f32.mrf.mxu0
        %v1779 = vadd.f32 %v1722, %v1778
        %v1780 = vpop.f32.mrf.mxu0
        %v1781 = vpop.f32.mrf.mxu0
        %v1782 = vadd.f32 %v1722, %v1781
        %v1783 = vpop.f32.mrf.mxu0
        %1784 = vmatprep.mubr.bf16.mxu0 0
        %1785 = vmatmul.mubr.bf16.gmra.mxu0 %v1000
        %v1786 = vpop.f32.mrf.mxu0
        %v1787 = vadd.f32 %v1722, %v1786
        %v1788 = vpop.f32.mrf.mxu0
        %v1789 = vpop.f32.mrf.mxu0
        %v1790 = vadd.f32 %v1722, %v1789
        %v1791 = vpop.f32.mrf.mxu0
        %1792 = vmatprep.mubr.bf16.mxu0 0
        %1793 = vmatmul.mubr.bf16.gmra.mxu0 %v1003
        %v1794 = vpop.f32.mrf.mxu0
        %v1795 = vadd.f32 %v1722, %v1794
        %v1796 = vpop.f32.mrf.mxu0
        %v1797 = vpop.f32.mrf.mxu0
        %v1798 = vadd.f32 %v1722, %v1797
        %v1799 = vpop.f32.mrf.mxu0
        %1800 = vdwg.mxu0
        %v1801 = vmul.f32 %v1183, %v1214
        %v1802 = vmul.f32 %v1185, %v1215
        %v1803 = vmul.f32 %v1187, %v1216
        %v1804 = vmul.f32 %v1189, %v1217
        %v1805 = vmul.f32 %v1191, %v1218
        %v1806 = vmul.f32 %v1193, %v1219
        %v1807 = vmul.f32 %v1195, %v1220
        %v1808 = vmul.f32 %v1197, %v1221
        %v1810 = vsel %vm1318, %v1801, 0
        %v1813 = vsel %vm1318, %v1802, 0
        %v1816 = vsel %vm1318, %v1803, 0
        %v1819 = vsel %vm1318, %v1804, 0
        %v1822 = vsel %vm1318, %v1805, 0
        %v1825 = vsel %vm1318, %v1806, 0
        %v1828 = vsel %vm1318, %v1807, 0
        %v1831 = vsel %vm1318, %v1808, 0
        %1833 = vmatprep.subr.mxu0 0.0
        %1834 = vmatpush1.msra.mxu0 0.0
        %1835 = vmatprep.subr.mxu0 0.0
        %1836 = vmatpush1.msra.mxu0 0.0
        %1837 = vmatprep.subr.mxu0 0.0
        %1838 = vmatpush1.msra.mxu0 0.0
        %1839 = vmatprep.subr.mxu0 0.0
        %1840 = vmatpush1.msra.mxu0 0.0
        %1841 = vmatprep.subr.mxu0 0.0
        %1842 = vmatpush1.msra.mxu0 0.0
        %1843 = vmatprep.subr.mxu0 0.0
        %1844 = vmatpush1.msra.mxu0 0.0
        %1845 = vmatprep.subr.mxu0 0.0
        %1846 = vmatpush1.msra.mxu0 0.0
        %1847 = vmatprep.subr.mxu0 0.0
        %1848 = vmatpush1.msra.mxu0 0.0
        %1849 = vmatprep.subr.mxu0 0.0
        %1850 = vmatpush1.msra.mxu0 0.0
        %1851 = vmatprep.subr.mxu0 0.0
        %1852 = vmatpush1.msra.mxu0 0.0
        %1853 = vmatprep.subr.mxu0 0.0
        %1854 = vmatpush1.msra.mxu0 0.0
        %1855 = vmatprep.subr.mxu0 0.0
        %1856 = vmatpush1.msra.mxu0 0.0
        %1857 = vmatprep.subr.mxu0 0.0
        %1858 = vmatpush1.msra.mxu0 0.0
        %1859 = vmatprep.subr.mxu0 0.0
        %1860 = vmatpush1.msra.mxu0 0.0
        %1861 = vmatprep.subr.mxu0 0.0
        %1862 = vmatpush1.msra.mxu0 0.0
        %1863 = vmatprep.subr.mxu0 0.0
        %1864 = vmatpush1.msra.mxu0 %v1345
        %1865 = vmatprep.subr.mxu0 0.0
        %1866 = vmatpush2.msra.mxu0 0.0
        %1867 = vmatprep.subr.mxu0 0.0
        %1868 = vmatpush2.msra.mxu0 0.0
        %1869 = vmatprep.subr.mxu0 0.0
        %1870 = vmatpush2.msra.mxu0 0.0
        %1871 = vmatprep.subr.mxu0 0.0
        %1872 = vmatpush2.msra.mxu0 0.0
        %1873 = vmatprep.subr.mxu0 0.0
        %1874 = vmatpush2.msra.mxu0 0.0
        %1875 = vmatprep.subr.mxu0 0.0
        %1876 = vmatpush2.msra.mxu0 0.0
        %1877 = vmatprep.subr.mxu0 0.0
        %1878 = vmatpush2.msra.mxu0 0.0
        %1879 = vmatprep.subr.mxu0 0.0
        %1880 = vmatpush2.msra.mxu0 0.0
        %1881 = vmatprep.subr.mxu0 0.0
        %1882 = vmatpush2.msra.mxu0 0.0
        %1883 = vmatprep.subr.mxu0 0.0
        %1884 = vmatpush2.msra.mxu0 0.0
        %1885 = vmatprep.subr.mxu0 0.0
        %1886 = vmatpush2.msra.mxu0 0.0
        %1887 = vmatprep.subr.mxu0 0.0
        %1888 = vmatpush2.msra.mxu0 0.0
        %1889 = vmatprep.subr.mxu0 0.0
        %1890 = vmatpush2.msra.mxu0 0.0
        %1891 = vmatprep.subr.mxu0 0.0
        %1892 = vmatpush2.msra.mxu0 0.0
        %1893 = vmatprep.subr.mxu0 0.0
        %1894 = vmatpush2.msra.mxu0 0.0
        %1895 = vmatprep.subr.mxu0 0.0
        %1896 = vmatpush2.msra.mxu0 0.0
        %1897 = vmatprep.mubr.f32.mxu0 0.0
        %1898 = vmatmul.mubr.f32.gmra.mxu0 %v1810
        %v1899 = vpop.f32.mrf.mxu0
        %v1900 = vadd.f32 0.0, %v1899
        %v1901 = vpop.f32.mrf.mxu0
        %1902 = vmatprep.mubr.f32.mxu0 0.0
        %1903 = vmatmul.mubr.f32.gmra.mxu0 %v1813
        %v1904 = vpop.f32.mrf.mxu0
        %v1905 = vadd.f32 0.0, %v1904
        %v1906 = vpop.f32.mrf.mxu0
        %1907 = vmatprep.mubr.f32.mxu0 0.0
        %1908 = vmatmul.mubr.f32.gmra.mxu0 %v1816
        %v1909 = vpop.f32.mrf.mxu0
        %v1910 = vadd.f32 0.0, %v1909
        %v1911 = vpop.f32.mrf.mxu0
        %1912 = vmatprep.mubr.f32.mxu0 0.0
        %1913 = vmatmul.mubr.f32.gmra.mxu0 %v1819
        %v1914 = vpop.f32.mrf.mxu0
        %v1915 = vadd.f32 0.0, %v1914
        %v1916 = vpop.f32.mrf.mxu0
        %1917 = vmatprep.mubr.f32.mxu0 0.0
        %1918 = vmatmul.mubr.f32.gmra.mxu0 %v1822
        %v1919 = vpop.f32.mrf.mxu0
        %v1920 = vadd.f32 0.0, %v1919
        %v1921 = vpop.f32.mrf.mxu0
        %1922 = vmatprep.mubr.f32.mxu0 0.0
        %1923 = vmatmul.mubr.f32.gmra.mxu0 %v1825
        %v1924 = vpop.f32.mrf.mxu0
        %v1925 = vadd.f32 0.0, %v1924
        %v1926 = vpop.f32.mrf.mxu0
        %1927 = vmatprep.mubr.f32.mxu0 0.0
        %1928 = vmatmul.mubr.f32.gmra.mxu0 %v1828
        %v1929 = vpop.f32.mrf.mxu0
        %v1930 = vadd.f32 0.0, %v1929
        %v1931 = vpop.f32.mrf.mxu0
        %1932 = vmatprep.mubr.f32.mxu0 0.0
        %1933 = vmatmul.mubr.f32.gmra.mxu0 %v1831
        %v1934 = vpop.f32.mrf.mxu0
        %v1935 = vadd.f32 0.0, %v1934
        %v1936 = vpop.f32.mrf.mxu0
        %1937 = vdwg.mxu0
        %v1938 = vmul.f32 %v1900, %v1771
        %v1939 = vmul.f32 %v1905, %v1774
        %v1940 = vmul.f32 %v1910, %v1779
        %v1941 = vmul.f32 %v1915, %v1782
        %v1942 = vmul.f32 %v1920, %v1787
        %v1943 = vmul.f32 %v1925, %v1790
        %v1944 = vmul.f32 %v1930, %v1795
        %v1945 = vmul.f32 %v1935, %v1798
        %v1946 = vadd.f32 %v1703, %v1938
        %v1947 = vadd.f32 %v1704, %v1939
        %v1948 = vadd.f32 %v1705, %v1940
        %v1949 = vadd.f32 %v1706, %v1941
        %v1950 = vadd.f32 %v1707, %v1942
        %v1951 = vadd.f32 %v1708, %v1943
        %v1952 = vadd.f32 %v1709, %v1944
        %v1953 = vadd.f32 %v1710, %v1945
        %1954 = vst.msk [vmem:[%s491] sm:$0xff] %vm546, %v1946
        %1955 = vst.msk [vmem:[%s491 + $0x8] sm:$0xff] %vm546, %v1947
        %1956 = vst.msk [vmem:[%s491 + $0x10] sm:$0xff] %vm546, %v1948
        %1957 = vst.msk [vmem:[%s491 + $0x18] sm:$0xff] %vm546, %v1949
        %1958 = vst.msk [vmem:[%s491 + $0x20] sm:$0xff] %vm546, %v1950
        %1959 = vst.msk [vmem:[%s491 + $0x28] sm:$0xff] %vm546, %v1951
        %1960 = vst.msk [vmem:[%s491 + $0x30] sm:$0xff] %vm546, %v1952
        %1961 = vst.msk [vmem:[%s491 + $0x38] sm:$0xff] %vm546, %v1953
        %s1962 = smul.u32 8, %s20
        %p1963 = scmp.lt.s32.totalorder %s1962, 15
        %s1964 = scalar_select %p1963, %s1962, 15
        %s1965 = smul.addr %s1964, 8
        %s1966 = scalar_lea.vmem %s9, %s1965
        // Predicated region
        $region98: #{tpu_custom_call.1} parent=92 // pred_check
          %p1967 = pneg %p237
        $region99: #{tpu_custom_call.1} parent=92 // pred_check_branch
          %1969 = sbr.rel (%p1967) target = $region101
        $region100: #{tpu_custom_call.1} parent=92 // pred_region
          %s1970 = smul.u32 8, %s20
        $region101: #{tpu_custom_call.1} parent=92 // pred_fallthru
          _
      $region93: #{tpu_custom_call.1} parent=5 // pred_fallthru
        _
      %p1971 = scmp.le.s32.totalorder 2, %s15
      // Predicated region
      $region102: #{tpu_custom_call.1} parent=5 // pred_check
        %p1972 = pneg %p1971
      $region103: #{tpu_custom_call.1} parent=5 // pred_check_branch
        %1974 = sbr.rel (%p1972) target = $region105
      $region104: #{tpu_custom_call.1} parent=5 // pred_region
        %s1975 = ssub.s32 %s15, 2
        // Predicated region
        $region106: #{tpu_custom_call.1} parent=104 // pred_check
          %p1976 = pneg %p243
        $region107: #{tpu_custom_call.1} parent=104 // pred_check_branch
          %1978 = sbr.rel (%p1976) target = $region109
        $region108: #{tpu_custom_call.1} parent=104 // pred_region
          %s1979 = smul.u32 8, %s21
          %p1980 = scmp.lt.s32.totalorder %s1979, 15
          %s1981 = scalar_select %p1980, %s1979, 15
          %s1982 = smul.addr %s1981, 8
          %s1983 = scalar_lea.vmem %s9, %s1982
        $region109: #{tpu_custom_call.1} parent=104 // pred_fallthru
          _
      $region105: #{tpu_custom_call.1} parent=5 // pred_fallthru
        _
    $region6: #{tpu_custom_call.1} parent=1 // loop_footer
      %s19 = sadd.s32 1, %s15
    $region7: #{tpu_custom_call.1} parent=1 // loop_footer_branch
      %14 = sbr.rel target = $region3
    $region8: #{tpu_custom_call.1} parent=1 // loop_exit
      _

</llo_original>
